<compile_context>
chip_gen: v5e
topology: v5e:2x2
jax: 0.10.0
libtpu: 0.0.40
codegen_flags: <defaults>
</compile_context>

<pallas_src>
import jax
import jax.numpy as jnp
from jax.experimental import pallas as pl
from jax.experimental.pallas import tpu as pltpu


# ----------------------------- fused layer kernel -----------------------------

def _layer_kernel(a_in_ref, a_rev_ref, x_ref,
                  relagg_in_ref, relagg_rev_ref, loop_rel_ref,
                  w_in_ref, w_out_ref, w_loop_ref,
                  inv_in_ref, inv_rev_ref,
                  bias_ref, gamma_ref, beta_ref,
                  o_ref):
    f32 = jnp.float32

    # ---- forward ('in') direction: aggregate, subtract relation sums, norm, project ----
    agg_in = jnp.dot(a_in_ref[...], x_ref[...], preferred_element_type=f32)   # [N, Fin]
    pre_in = (agg_in - relagg_in_ref[...]) * inv_in_ref[...]                  # f32 VPU
    emb_in = jnp.dot(pre_in.astype(jnp.bfloat16), w_in_ref[...],
                     preferred_element_type=f32)                              # [N, Fout]

    # ---- reverse ('out') direction ----
    agg_rev = jnp.dot(a_rev_ref[...], x_ref[...], preferred_element_type=f32)
    pre_rev = (agg_rev - relagg_rev_ref[...]) * inv_rev_ref[...]
    emb_rev = jnp.dot(pre_rev.astype(jnp.bfloat16), w_out_ref[...],
                      preferred_element_type=f32)

    # ---- self-loop messages: identity scatter, no norm ----
    pre_loop = x_ref[...].astype(f32) - loop_rel_ref[...]
    emb_loop = jnp.dot(pre_loop.astype(jnp.bfloat16), w_loop_ref[...],
                       preferred_element_type=f32)

    out = (emb_in + emb_rev + emb_loop) * (1.0 / 3.0) + bias_ref[...]

    # BatchNorm1d, training mode: batch statistics, biased variance, eps = 1e-5.
    mean = jnp.mean(out, axis=0, keepdims=True)
    diff = out - mean
    var = jnp.mean(diff * diff, axis=0, keepdims=True)
    out = diff * jax.lax.rsqrt(var + 1e-5)
    out = out * gamma_ref[...] + beta_ref[...]

    # activation = ReLU (chosen for this synthetic run)
    o_ref[...] = jnp.maximum(out, 0.0)


def pallas_compgcn_layer(a_in, a_rev, x, relagg_in, relagg_rev, loop_rel,
                         w_in, w_out, w_loop, inv_in, inv_rev,
                         bias, gamma, beta):
    n = x.shape[0]
    fout = w_in.shape[1]
    vmem = lambda: pl.BlockSpec(memory_space=pltpu.MemorySpace.VMEM)
    # No grid: every operand is O(N*N + N*F) bytes and VMEM-resident, so a
    # single invocation avoids all per-step pipeline overhead.
    # TODO(synk): if N*N or N*F outgrow VMEM, add an N-tile grid axis and turn
    # the BatchNorm epilogue into a two-pass (sum / sumsq) cross-tile reduction.
    return pl.pallas_call(
        _layer_kernel,
        out_shape=jax.ShapeDtypeStruct((n, fout), jnp.float32),
        in_specs=[vmem() for _ in range(14)],
        out_specs=vmem(),
    )(a_in, a_rev, x, relagg_in, relagg_rev, loop_rel,
      w_in, w_out, w_loop, inv_in, inv_rev, bias, gamma, beta)


# ----------------------------- JAX glue (model) -----------------------------

def _build_direction(n, num_rel_rows, rows, cols, etypes, rel_full):
    # A[i, j]  = #(edges j -> i)      (destination = rows, matches scatter target)
    # T[i, r]  = #(edges into i with relation r)
    a = jnp.zeros((n, n), jnp.float32).at[rows, cols].add(1.0)
    t = jnp.zeros((n, num_rel_rows), jnp.float32).at[rows, etypes].add(1.0)
    deg = jnp.sum(a, axis=1, keepdims=True)                   # == row_normalization deg
    inv = jnp.where(deg > 0.0, 1.0 / deg, 0.0)                # [N, 1] f32, 0 for isolated
    rel_agg = jnp.matmul(t, rel_full)                         # [N, Fin] f32 (tiny matmul)
    # counts are small integers -> exact in bf16 (holds for edge multiplicity <= 256)
    return a.astype(jnp.bfloat16), rel_agg, inv


def compgcn_layer_forward(p, edge_index, edge_type, x, rel_embed):
    n = x.shape[0]
    if "alpha" in p:  # basis-decomposed relation embeddings (tiny matmul -> XLA)
        rel_embed = jnp.matmul(p["alpha"], p["basis_weight"])            # [2R, Fin]
    rel_full = jnp.concatenate([rel_embed, p["loop_rel"]], axis=0)       # [2R+1, Fin]
    num_rel_rows = rel_full.shape[0]

    row, col = edge_index
    e = row.shape[0] // 2
    a_in, relagg_in, inv_in = _build_direction(
        n, num_rel_rows, row[:e], col[:e], edge_type[:e], rel_full)
    a_rev, relagg_rev, inv_rev = _build_direction(
        n, num_rel_rows, row[e:], col[e:], edge_type[e:], rel_full)

    out = pallas_compgcn_layer(
        a_in, a_rev, x.astype(jnp.bfloat16), relagg_in, relagg_rev,
        p["loop_rel"],
        p["weight_in"].astype(jnp.bfloat16),
        p["weight_out"].astype(jnp.bfloat16),
        p["weight_loop"].astype(jnp.bfloat16),
        inv_in, inv_rev, p["bias"], p["bn_gamma"], p["bn_beta"])
    # dropout p=0.0 -> identity

    # relation update: [2R+1,Fin] @ [Fin,Fout] with loop row dropped (tiny -> XLA)
    rel_out = jnp.matmul(rel_full[:-1], p["weight_rel"])                 # [2R, Fout]
    return out, rel_out


@jax.jit
def compgcn_forward(params, edge_index, edge_type, x):
    rel_embed = params["init_rel"]
    node_embed = x
    for layer_p in params["layers"]:
        node_embed, rel_embed = compgcn_layer_forward(
            layer_p, edge_index, edge_type, node_embed, rel_embed)
    return node_embed, rel_embed


# ----------------------------- parameter init -----------------------------

def xavier_normal(key, shape):
    std = (2.0 / (shape[0] + shape[1])) ** 0.5
    return std * jax.random.normal(key, shape, dtype=jnp.float32)


def xavier_uniform(key, shape):
    bound = (6.0 / (shape[0] + shape[1])) ** 0.5
    return jax.random.uniform(key, shape, minval=-bound, maxval=bound,
                              dtype=jnp.float32)


def init_layer(key, in_feats, out_feats, num_rels, num_bases):
    keys = jax.random.split(key, 8)
    p = {
        "weight_in": xavier_normal(keys[0], (in_feats, out_feats)),
        "weight_out": xavier_normal(keys[1], (in_feats, out_feats)),
        "weight_rel": xavier_normal(keys[2], (in_feats, out_feats)),
        "weight_loop": xavier_normal(keys[3], (in_feats, out_feats)),
        "loop_rel": xavier_normal(keys[4], (1, in_feats)),
        "bias": jnp.zeros((1, out_feats), jnp.float32),
        "bn_gamma": jnp.ones((1, out_feats), jnp.float32),
        "bn_beta": jnp.zeros((1, out_feats), jnp.float32),
    }
    if num_bases is not None and num_bases > 0:
        p["basis_weight"] = xavier_uniform(keys[5], (num_bases, in_feats))
        p["alpha"] = xavier_uniform(keys[6], (2 * num_rels, num_bases))
    return p


def init_compgcn(key, num_rels, num_bases, in_feats, hidden_size, out_feats, layers):
    k_emb, k0, k1 = jax.random.split(key, 3)
    n_emb = num_bases if (num_bases is not None and num_bases > 0) else 2 * num_rels
    params = {
        "init_rel": jax.random.normal(k_emb, (n_emb, in_feats), dtype=jnp.float32),
        "layers": [init_layer(k0, in_feats, hidden_size, num_rels,
                              num_bases if num_bases > 0 else None)],
    }
    if layers == 2:
        params["layers"].append(init_layer(k1, hidden_size, out_feats, num_rels, None))
    return params


# ----------------------------------- main -----------------------------------

if __name__ == "__main__":
    key = jax.random.PRNGKey(0)
    k_params, k_x, k_src, k_dst, k_typ = jax.random.split(key, 5)

    num_entities = 64
    num_rels = 4
    num_bases = 4
    in_feats = hidden_size = out_feats = 128
    num_edges = 256          # forward edges; reverse edges appended -> 512 total

    params = init_compgcn(k_params, num_rels, num_bases,
                          in_feats, hidden_size, out_feats, layers=2)

    x = jax.random.normal(k_x, (num_entities, in_feats), dtype=jnp.float32)

    src = jax.random.randint(k_src, (num_edges,), 0, num_entities, dtype=jnp.int32)
    dst = jax.random.randint(k_dst, (num_edges,), 0, num_entities, dtype=jnp.int32)
    typ = jax.random.randint(k_typ, (num_edges,), 0, num_rels, dtype=jnp.int32)

    # forward edges followed by reverse edges (CompGCN convention)
    row = jnp.concatenate([src, dst])
    col = jnp.concatenate([dst, src])
    edge_index = (row, col)
    edge_type = jnp.concatenate([typ, typ + num_rels])

    node_embed, rel_embed = compgcn_forward(params, edge_index, edge_type, x)
    node_embed = jax.block_until_ready(node_embed)
    rel_embed = jax.block_until_ready(rel_embed)

    assert node_embed.shape == (num_entities, out_feats)
    assert rel_embed.shape == (2 * num_rels, out_feats)
    assert bool(jnp.all(jnp.isfinite(node_embed)))
    assert bool(jnp.all(jnp.isfinite(rel_embed)))
    print("KERNEL_OK")
</pallas_src>

<mosaic_0001>
module attributes {stable_mosaic.version = 11 : i64} {
  func.func @_layer_kernel(%arg0: memref<64x64xbf16, #tpu.memory_space<vmem>>, %arg1: memref<64x64xbf16, #tpu.memory_space<vmem>>, %arg2: memref<64x128xbf16, #tpu.memory_space<vmem>>, %arg3: memref<64x128xf32, #tpu.memory_space<vmem>>, %arg4: memref<64x128xf32, #tpu.memory_space<vmem>>, %arg5: memref<1x128xf32, #tpu.memory_space<vmem>>, %arg6: memref<128x128xbf16, #tpu.memory_space<vmem>>, %arg7: memref<128x128xbf16, #tpu.memory_space<vmem>>, %arg8: memref<128x128xbf16, #tpu.memory_space<vmem>>, %arg9: memref<64x1xf32, #tpu.memory_space<vmem>>, %arg10: memref<64x1xf32, #tpu.memory_space<vmem>>, %arg11: memref<1x128xf32, #tpu.memory_space<vmem>>, %arg12: memref<1x128xf32, #tpu.memory_space<vmem>>, %arg13: memref<1x128xf32, #tpu.memory_space<vmem>>, %arg14: memref<64x128xf32, #tpu.memory_space<vmem>>) attributes {dimension_semantics = [], scalar_prefetch = 0 : i64, scratch_operands = 0 : i64, tpu.core_type = #tpu.core_type<tc>} {
    %c0 = arith.constant 0 : index
    %c0_0 = arith.constant 0 : index
    %0 = vector.load %arg0[%c0, %c0_0] : memref<64x64xbf16, #tpu.memory_space<vmem>>, vector<64x64xbf16>
    %c0_1 = arith.constant 0 : index
    %c0_2 = arith.constant 0 : index
    %1 = vector.load %arg2[%c0_1, %c0_2] : memref<64x128xbf16, #tpu.memory_space<vmem>>, vector<64x128xbf16>
    %cst = arith.constant dense<0.000000e+00> : vector<64x128xf32>
    %2 = tpu.matmul %0, %1, %cst {dimension_numbers = #tpu.dot_dimension_numbers<[1], [0], [0], [1], [0, 0, 1, 1], [], []>} : vector<64x64xbf16>, vector<64x128xbf16>, vector<64x128xf32> -> vector<64x128xf32>
    %c0_3 = arith.constant 0 : index
    %c0_4 = arith.constant 0 : index
    %3 = vector.load %arg3[%c0_3, %c0_4] : memref<64x128xf32, #tpu.memory_space<vmem>>, vector<64x128xf32>
    %4 = arith.subf %2, %3 : vector<64x128xf32>
    %c0_5 = arith.constant 0 : index
    %c0_6 = arith.constant 0 : index
    %5 = vector.load %arg9[%c0_5, %c0_6] : memref<64x1xf32, #tpu.memory_space<vmem>>, vector<64x1xf32>
    %6 = vector.broadcast %5 : vector<64x1xf32> to vector<64x128xf32>
    %7 = arith.mulf %4, %6 : vector<64x128xf32>
    %8 = arith.truncf %7 : vector<64x128xf32> to vector<64x128xbf16>
    %c0_7 = arith.constant 0 : index
    %c0_8 = arith.constant 0 : index
    %9 = vector.load %arg6[%c0_7, %c0_8] : memref<128x128xbf16, #tpu.memory_space<vmem>>, vector<128x128xbf16>
    %cst_9 = arith.constant dense<0.000000e+00> : vector<64x128xf32>
    %10 = tpu.matmul %8, %9, %cst_9 {dimension_numbers = #tpu.dot_dimension_numbers<[1], [0], [0], [1], [0, 0, 1, 1], [], []>} : vector<64x128xbf16>, vector<128x128xbf16>, vector<64x128xf32> -> vector<64x128xf32>
    %c0_10 = arith.constant 0 : index
    %c0_11 = arith.constant 0 : index
    %11 = vector.load %arg1[%c0_10, %c0_11] : memref<64x64xbf16, #tpu.memory_space<vmem>>, vector<64x64xbf16>
    %c0_12 = arith.constant 0 : index
    %c0_13 = arith.constant 0 : index
    %12 = vector.load %arg2[%c0_12, %c0_13] : memref<64x128xbf16, #tpu.memory_space<vmem>>, vector<64x128xbf16>
    %cst_14 = arith.constant dense<0.000000e+00> : vector<64x128xf32>
    %13 = tpu.matmul %11, %12, %cst_14 {dimension_numbers = #tpu.dot_dimension_numbers<[1], [0], [0], [1], [0, 0, 1, 1], [], []>} : vector<64x64xbf16>, vector<64x128xbf16>, vector<64x128xf32> -> vector<64x128xf32>
    %c0_15 = arith.constant 0 : index
    %c0_16 = arith.constant 0 : index
    %14 = vector.load %arg4[%c0_15, %c0_16] : memref<64x128xf32, #tpu.memory_space<vmem>>, vector<64x128xf32>
    %15 = arith.subf %13, %14 : vector<64x128xf32>
    %c0_17 = arith.constant 0 : index
    %c0_18 = arith.constant 0 : index
    %16 = vector.load %arg10[%c0_17, %c0_18] : memref<64x1xf32, #tpu.memory_space<vmem>>, vector<64x1xf32>
    %17 = vector.broadcast %16 : vector<64x1xf32> to vector<64x128xf32>
    %18 = arith.mulf %15, %17 : vector<64x128xf32>
    %19 = arith.truncf %18 : vector<64x128xf32> to vector<64x128xbf16>
    %c0_19 = arith.constant 0 : index
    %c0_20 = arith.constant 0 : index
    %20 = vector.load %arg7[%c0_19, %c0_20] : memref<128x128xbf16, #tpu.memory_space<vmem>>, vector<128x128xbf16>
    %cst_21 = arith.constant dense<0.000000e+00> : vector<64x128xf32>
    %21 = tpu.matmul %19, %20, %cst_21 {dimension_numbers = #tpu.dot_dimension_numbers<[1], [0], [0], [1], [0, 0, 1, 1], [], []>} : vector<64x128xbf16>, vector<128x128xbf16>, vector<64x128xf32> -> vector<64x128xf32>
    %c0_22 = arith.constant 0 : index
    %c0_23 = arith.constant 0 : index
    %22 = vector.load %arg2[%c0_22, %c0_23] : memref<64x128xbf16, #tpu.memory_space<vmem>>, vector<64x128xbf16>
    %23 = arith.extf %22 : vector<64x128xbf16> to vector<64x128xf32>
    %c0_24 = arith.constant 0 : index
    %c0_25 = arith.constant 0 : index
    %24 = vector.load %arg5[%c0_24, %c0_25] : memref<1x128xf32, #tpu.memory_space<vmem>>, vector<1x128xf32>
    %25 = vector.broadcast %24 : vector<1x128xf32> to vector<64x128xf32>
    %26 = arith.subf %23, %25 : vector<64x128xf32>
    %27 = arith.truncf %26 : vector<64x128xf32> to vector<64x128xbf16>
    %c0_26 = arith.constant 0 : index
    %c0_27 = arith.constant 0 : index
    %28 = vector.load %arg8[%c0_26, %c0_27] : memref<128x128xbf16, #tpu.memory_space<vmem>>, vector<128x128xbf16>
    %cst_28 = arith.constant dense<0.000000e+00> : vector<64x128xf32>
    %29 = tpu.matmul %27, %28, %cst_28 {dimension_numbers = #tpu.dot_dimension_numbers<[1], [0], [0], [1], [0, 0, 1, 1], [], []>} : vector<64x128xbf16>, vector<128x128xbf16>, vector<64x128xf32> -> vector<64x128xf32>
    %30 = arith.addf %10, %21 : vector<64x128xf32>
    %31 = arith.addf %30, %29 : vector<64x128xf32>
    %cst_29 = arith.constant 0.333333343 : f32
    %32 = vector.broadcast %cst_29 : f32 to vector<64x128xf32>
    %33 = arith.mulf %31, %32 : vector<64x128xf32>
    %c0_30 = arith.constant 0 : index
    %c0_31 = arith.constant 0 : index
    %34 = vector.load %arg11[%c0_30, %c0_31] : memref<1x128xf32, #tpu.memory_space<vmem>>, vector<1x128xf32>
    %35 = vector.broadcast %34 : vector<1x128xf32> to vector<64x128xf32>
    %36 = arith.addf %33, %35 : vector<64x128xf32>
    %cst_32 = arith.constant dense<0.000000e+00> : vector<128xf32>
    %37 = vector.multi_reduction <add>, %36, %cst_32 [0] : vector<64x128xf32> to vector<128xf32>
    %38 = vector.shape_cast %37 : vector<128xf32> to vector<1x128xf32>
    %cst_33 = arith.constant 6.400000e+01 : f32
    %39 = vector.broadcast %cst_33 : f32 to vector<1x128xf32>
    %40 = arith.divf %38, %39 : vector<1x128xf32>
    %41 = vector.broadcast %40 : vector<1x128xf32> to vector<64x128xf32>
    %42 = arith.subf %36, %41 : vector<64x128xf32>
    %43 = arith.mulf %42, %42 : vector<64x128xf32>
    %cst_34 = arith.constant dense<0.000000e+00> : vector<128xf32>
    %44 = vector.multi_reduction <add>, %43, %cst_34 [0] : vector<64x128xf32> to vector<128xf32>
    %45 = vector.shape_cast %44 : vector<128xf32> to vector<1x128xf32>
    %cst_35 = arith.constant 6.400000e+01 : f32
    %46 = vector.broadcast %cst_35 : f32 to vector<1x128xf32>
    %47 = arith.divf %45, %46 : vector<1x128xf32>
    %cst_36 = arith.constant 9.99999974E-6 : f32
    %48 = vector.broadcast %cst_36 : f32 to vector<1x128xf32>
    %49 = arith.addf %47, %48 : vector<1x128xf32>
    %50 = math.rsqrt %49 : vector<1x128xf32>
    %51 = vector.broadcast %50 : vector<1x128xf32> to vector<64x128xf32>
    %52 = arith.mulf %42, %51 : vector<64x128xf32>
    %c0_37 = arith.constant 0 : index
    %c0_38 = arith.constant 0 : index
    %53 = vector.load %arg12[%c0_37, %c0_38] : memref<1x128xf32, #tpu.memory_space<vmem>>, vector<1x128xf32>
    %54 = vector.broadcast %53 : vector<1x128xf32> to vector<64x128xf32>
    %55 = arith.mulf %52, %54 : vector<64x128xf32>
    %c0_39 = arith.constant 0 : index
    %c0_40 = arith.constant 0 : index
    %56 = vector.load %arg13[%c0_39, %c0_40] : memref<1x128xf32, #tpu.memory_space<vmem>>, vector<1x128xf32>
    %57 = vector.broadcast %56 : vector<1x128xf32> to vector<64x128xf32>
    %58 = arith.addf %55, %57 : vector<64x128xf32>
    %cst_41 = arith.constant 0.000000e+00 : f32
    %59 = vector.broadcast %cst_41 : f32 to vector<64x128xf32>
    %60 = arith.maximumf %58, %59 : vector<64x128xf32>
    %c0_42 = arith.constant 0 : index
    %c0_43 = arith.constant 0 : index
    %61 = vector.load %arg14[%c0_42, %c0_43] : memref<64x128xf32, #tpu.memory_space<vmem>>, vector<64x128xf32>
    tpu.vector_store %arg14[%c0_42, %c0_43], %60 {strides = array<i32>} : memref<64x128xf32, #tpu.memory_space<vmem>>, vector<64x128xf32>,
    return
  }
}

module attributes {stable_mosaic.version = 11 : i64} {
  func.func @_layer_kernel(%arg0: memref<64x64xbf16, #tpu.memory_space<vmem>>, %arg1: memref<64x64xbf16, #tpu.memory_space<vmem>>, %arg2: memref<64x128xbf16, #tpu.memory_space<vmem>>, %arg3: memref<64x128xf32, #tpu.memory_space<vmem>>, %arg4: memref<64x128xf32, #tpu.memory_space<vmem>>, %arg5: memref<1x128xf32, #tpu.memory_space<vmem>>, %arg6: memref<128x128xbf16, #tpu.memory_space<vmem>>, %arg7: memref<128x128xbf16, #tpu.memory_space<vmem>>, %arg8: memref<128x128xbf16, #tpu.memory_space<vmem>>, %arg9: memref<64x1xf32, #tpu.memory_space<vmem>>, %arg10: memref<64x1xf32, #tpu.memory_space<vmem>>, %arg11: memref<1x128xf32, #tpu.memory_space<vmem>>, %arg12: memref<1x128xf32, #tpu.memory_space<vmem>>, %arg13: memref<1x128xf32, #tpu.memory_space<vmem>>, %arg14: memref<64x128xf32, #tpu.memory_space<vmem>>) attributes {dimension_semantics = [], scalar_prefetch = 0 : i64, scratch_operands = 0 : i64, tpu.core_type = #tpu.core_type<tc>} {
    %c0 = arith.constant 0 : index
    %c0_0 = arith.constant 0 : index
    %0 = vector.load %arg0[%c0, %c0_0] : memref<64x64xbf16, #tpu.memory_space<vmem>>, vector<64x64xbf16>
    %c0_1 = arith.constant 0 : index
    %c0_2 = arith.constant 0 : index
    %1 = vector.load %arg2[%c0_1, %c0_2] : memref<64x128xbf16, #tpu.memory_space<vmem>>, vector<64x128xbf16>
    %cst = arith.constant dense<0.000000e+00> : vector<64x128xf32>
    %2 = tpu.matmul %0, %1, %cst {dimension_numbers = #tpu.dot_dimension_numbers<[1], [0], [0], [1], [0, 0, 1, 1], [], []>} : vector<64x64xbf16>, vector<64x128xbf16>, vector<64x128xf32> -> vector<64x128xf32>
    %c0_3 = arith.constant 0 : index
    %c0_4 = arith.constant 0 : index
    %3 = vector.load %arg3[%c0_3, %c0_4] : memref<64x128xf32, #tpu.memory_space<vmem>>, vector<64x128xf32>
    %4 = arith.subf %2, %3 : vector<64x128xf32>
    %c0_5 = arith.constant 0 : index
    %c0_6 = arith.constant 0 : index
    %5 = vector.load %arg9[%c0_5, %c0_6] : memref<64x1xf32, #tpu.memory_space<vmem>>, vector<64x1xf32>
    %6 = vector.broadcast %5 : vector<64x1xf32> to vector<64x128xf32>
    %7 = arith.mulf %4, %6 : vector<64x128xf32>
    %8 = arith.truncf %7 : vector<64x128xf32> to vector<64x128xbf16>
    %c0_7 = arith.constant 0 : index
    %c0_8 = arith.constant 0 : index
    %9 = vector.load %arg6[%c0_7, %c0_8] : memref<128x128xbf16, #tpu.memory_space<vmem>>, vector<128x128xbf16>
    %cst_9 = arith.constant dense<0.000000e+00> : vector<64x128xf32>
    %10 = tpu.matmul %8, %9, %cst_9 {dimension_numbers = #tpu.dot_dimension_numbers<[1], [0], [0], [1], [0, 0, 1, 1], [], []>} : vector<64x128xbf16>, vector<128x128xbf16>, vector<64x128xf32> -> vector<64x128xf32>
    %c0_10 = arith.constant 0 : index
    %c0_11 = arith.constant 0 : index
    %11 = vector.load %arg1[%c0_10, %c0_11] : memref<64x64xbf16, #tpu.memory_space<vmem>>, vector<64x64xbf16>
    %c0_12 = arith.constant 0 : index
    %c0_13 = arith.constant 0 : index
    %12 = vector.load %arg2[%c0_12, %c0_13] : memref<64x128xbf16, #tpu.memory_space<vmem>>, vector<64x128xbf16>
    %cst_14 = arith.constant dense<0.000000e+00> : vector<64x128xf32>
    %13 = tpu.matmul %11, %12, %cst_14 {dimension_numbers = #tpu.dot_dimension_numbers<[1], [0], [0], [1], [0, 0, 1, 1], [], []>} : vector<64x64xbf16>, vector<64x128xbf16>, vector<64x128xf32> -> vector<64x128xf32>
    %c0_15 = arith.constant 0 : index
    %c0_16 = arith.constant 0 : index
    %14 = vector.load %arg4[%c0_15, %c0_16] : memref<64x128xf32, #tpu.memory_space<vmem>>, vector<64x128xf32>
    %15 = arith.subf %13, %14 : vector<64x128xf32>
    %c0_17 = arith.constant 0 : index
    %c0_18 = arith.constant 0 : index
    %16 = vector.load %arg10[%c0_17, %c0_18] : memref<64x1xf32, #tpu.memory_space<vmem>>, vector<64x1xf32>
    %17 = vector.broadcast %16 : vector<64x1xf32> to vector<64x128xf32>
    %18 = arith.mulf %15, %17 : vector<64x128xf32>
    %19 = arith.truncf %18 : vector<64x128xf32> to vector<64x128xbf16>
    %c0_19 = arith.constant 0 : index
    %c0_20 = arith.constant 0 : index
    %20 = vector.load %arg7[%c0_19, %c0_20] : memref<128x128xbf16, #tpu.memory_space<vmem>>, vector<128x128xbf16>
    %cst_21 = arith.constant dense<0.000000e+00> : vector<64x128xf32>
    %21 = tpu.matmul %19, %20, %cst_21 {dimension_numbers = #tpu.dot_dimension_numbers<[1], [0], [0], [1], [0, 0, 1, 1], [], []>} : vector<64x128xbf16>, vector<128x128xbf16>, vector<64x128xf32> -> vector<64x128xf32>
    %c0_22 = arith.constant 0 : index
    %c0_23 = arith.constant 0 : index
    %22 = vector.load %arg2[%c0_22, %c0_23] : memref<64x128xbf16, #tpu.memory_space<vmem>>, vector<64x128xbf16>
    %23 = arith.extf %22 : vector<64x128xbf16> to vector<64x128xf32>
    %c0_24 = arith.constant 0 : index
    %c0_25 = arith.constant 0 : index
    %24 = vector.load %arg5[%c0_24, %c0_25] : memref<1x128xf32, #tpu.memory_space<vmem>>, vector<1x128xf32>
    %25 = vector.broadcast %24 : vector<1x128xf32> to vector<64x128xf32>
    %26 = arith.subf %23, %25 : vector<64x128xf32>
    %27 = arith.truncf %26 : vector<64x128xf32> to vector<64x128xbf16>
    %c0_26 = arith.constant 0 : index
    %c0_27 = arith.constant 0 : index
    %28 = vector.load %arg8[%c0_26, %c0_27] : memref<128x128xbf16, #tpu.memory_space<vmem>>, vector<128x128xbf16>
    %cst_28 = arith.constant dense<0.000000e+00> : vector<64x128xf32>
    %29 = tpu.matmul %27, %28, %cst_28 {dimension_numbers = #tpu.dot_dimension_numbers<[1], [0], [0], [1], [0, 0, 1, 1], [], []>} : vector<64x128xbf16>, vector<128x128xbf16>, vector<64x128xf32> -> vector<64x128xf32>
    %30 = arith.addf %10, %21 : vector<64x128xf32>
    %31 = arith.addf %30, %29 : vector<64x128xf32>
    %cst_29 = arith.constant 0.333333343 : f32
    %32 = vector.broadcast %cst_29 : f32 to vector<64x128xf32>
    %33 = arith.mulf %31, %32 : vector<64x128xf32>
    %c0_30 = arith.constant 0 : index
    %c0_31 = arith.constant 0 : index
    %34 = vector.load %arg11[%c0_30, %c0_31] : memref<1x128xf32, #tpu.memory_space<vmem>>, vector<1x128xf32>
    %35 = vector.broadcast %34 : vector<1x128xf32> to vector<64x128xf32>
    %36 = arith.addf %33, %35 : vector<64x128xf32>
    %cst_32 = arith.constant dense<0.000000e+00> : vector<128xf32>
    %37 = vector.multi_reduction <add>, %36, %cst_32 [0] : vector<64x128xf32> to vector<128xf32>
    %38 = vector.shape_cast %37 : vector<128xf32> to vector<1x128xf32>
    %cst_33 = arith.constant 6.400000e+01 : f32
    %39 = vector.broadcast %cst_33 : f32 to vector<1x128xf32>
    %40 = arith.divf %38, %39 : vector<1x128xf32>
    %41 = vector.broadcast %40 : vector<1x128xf32> to vector<64x128xf32>
    %42 = arith.subf %36, %41 : vector<64x128xf32>
    %43 = arith.mulf %42, %42 : vector<64x128xf32>
    %cst_34 = arith.constant dense<0.000000e+00> : vector<128xf32>
    %44 = vector.multi_reduction <add>, %43, %cst_34 [0] : vector<64x128xf32> to vector<128xf32>
    %45 = vector.shape_cast %44 : vector<128xf32> to vector<1x128xf32>
    %cst_35 = arith.constant 6.400000e+01 : f32
    %46 = vector.broadcast %cst_35 : f32 to vector<1x128xf32>
    %47 = arith.divf %45, %46 : vector<1x128xf32>
    %cst_36 = arith.constant 9.99999974E-6 : f32
    %48 = vector.broadcast %cst_36 : f32 to vector<1x128xf32>
    %49 = arith.addf %47, %48 : vector<1x128xf32>
    %50 = math.rsqrt %49 : vector<1x128xf32>
    %51 = vector.broadcast %50 : vector<1x128xf32> to vector<64x128xf32>
    %52 = arith.mulf %42, %51 : vector<64x128xf32>
    %c0_37 = arith.constant 0 : index
    %c0_38 = arith.constant 0 : index
    %53 = vector.load %arg12[%c0_37, %c0_38] : memref<1x128xf32, #tpu.memory_space<vmem>>, vector<1x128xf32>
    %54 = vector.broadcast %53 : vector<1x128xf32> to vector<64x128xf32>
    %55 = arith.mulf %52, %54 : vector<64x128xf32>
    %c0_39 = arith.constant 0 : index
    %c0_40 = arith.constant 0 : index
    %56 = vector.load %arg13[%c0_39, %c0_40] : memref<1x128xf32, #tpu.memory_space<vmem>>, vector<1x128xf32>
    %57 = vector.broadcast %56 : vector<1x128xf32> to vector<64x128xf32>
    %58 = arith.addf %55, %57 : vector<64x128xf32>
    %cst_41 = arith.constant 0.000000e+00 : f32
    %59 = vector.broadcast %cst_41 : f32 to vector<64x128xf32>
    %60 = arith.maximumf %58, %59 : vector<64x128xf32>
    %c0_42 = arith.constant 0 : index
    %c0_43 = arith.constant 0 : index
    %61 = vector.load %arg14[%c0_42, %c0_43] : memref<64x128xf32, #tpu.memory_space<vmem>>, vector<64x128xf32>
    tpu.vector_store %arg14[%c0_42, %c0_43], %60 {strides = array<i32>} : memref<64x128xf32, #tpu.memory_space<vmem>>, vector<64x128xf32>,
    return
  }
}

</mosaic_0001>

<llo_original>
// kernel: compgcn_forward.3
$region0: #{compgcn_forward.3}
  #allocation0 [shape = 'u32[]', space=smem, size = 0x4, offset = 0x4, fixed_abs, tag = 'smem constant byte address 0x4 - core index']
  #allocation1 [shape = 'u32[72,128]{1,0:T(1,128)}', space=vmem, size = 0x9000, scoped, tag = 'internal scratch']
  %s0 = inlined_call_operand.vmem [shape: bf16[64,64], index: 0, kind: input, shape index: {}]
  %s1 = inlined_call_operand.vmem [shape: bf16[64,64], index: 1, kind: input, shape index: {}]
  %s2 = inlined_call_operand.vmem [shape: bf16[64,128], index: 2, kind: input, shape index: {}]
  %s3 = inlined_call_operand.vmem [shape: f32[64,128], index: 3, kind: input, shape index: {}]
  %s4 = inlined_call_operand.vmem [shape: f32[64,128], index: 4, kind: input, shape index: {}]
  %s5 = inlined_call_operand.vmem [shape: f32[1,128], index: 5, kind: input, shape index: {}]
  %s6 = inlined_call_operand.vmem [shape: bf16[128,128], index: 6, kind: input, shape index: {}]
  %s7 = inlined_call_operand.vmem [shape: bf16[128,128], index: 7, kind: input, shape index: {}]
  %s8 = inlined_call_operand.vmem [shape: bf16[128,128], index: 8, kind: input, shape index: {}]
  %s9 = inlined_call_operand.vmem [shape: f32[64,1], index: 9, kind: input, shape index: {}]
  %s10 = inlined_call_operand.vmem [shape: f32[64,1], index: 10, kind: input, shape index: {}]
  %s11 = inlined_call_operand.vmem [shape: f32[1,128], index: 11, kind: input, shape index: {}]
  %s12 = inlined_call_operand.vmem [shape: f32[1,128], index: 12, kind: input, shape index: {}]
  %s13 = inlined_call_operand.vmem [shape: f32[1,128], index: 13, kind: input, shape index: {}]
  %s14 = inlined_call_operand.hbm [shape: f32[64,128], index: 14, kind: output, shape index: {}]
  %s15 = sld [smem:[#allocation0]]
  $region66: #{compgcn_forward.3} parent=0
    _
  %s17 = ssub.s32 1, %s15
  %s18 = scalar_select 0, %s17, %s15
  $region1: #{compgcn_forward.3} parent=0
    #allocation2 [shape = 'u8[32768]{0}', space=vmem, size = 0x8000, scoped, tag = 'output window, operand 0, single buffered']
    #allocation3 [shape = 's32[1]{0}', space=sflag, size = 0x4, scoped, tag = 'scoped memory for compgcn_forward.3']
    %19 = vsyncpa [#allocation3], 0
    // Predicated region
    $region2: #{compgcn_forward.3} parent=1 // pred_check
      _
    $region3: #{compgcn_forward.3} parent=1 // pred_check_branch
      %21 = sbr.rel (0) target = $region5
    $region4: #{compgcn_forward.3} parent=1 // pred_region
      _
    $region5: #{compgcn_forward.3} parent=1 // pred_fallthru
      _
    // Predicated region
    $region6: #{compgcn_forward.3} parent=1 // pred_check
      _
    $region7: #{compgcn_forward.3} parent=1 // pred_check_branch
      %23 = sbr.rel (0) target = $region9
    $region8: #{compgcn_forward.3} parent=1 // pred_region
      _
    $region9: #{compgcn_forward.3} parent=1 // pred_fallthru
      _
    // Predicated region
    $region10: #{compgcn_forward.3} parent=1 // pred_check
      _
    $region11: #{compgcn_forward.3} parent=1 // pred_check_branch
      %25 = sbr.rel (0) target = $region13
    $region12: #{compgcn_forward.3} parent=1 // pred_region
      _
    $region13: #{compgcn_forward.3} parent=1 // pred_fallthru
      _
    // Predicated region
    $region14: #{compgcn_forward.3} parent=1 // pred_check
      _
    $region15: #{compgcn_forward.3} parent=1 // pred_check_branch
      %27 = sbr.rel (0) target = $region17
    $region16: #{compgcn_forward.3} parent=1 // pred_region
      _
    $region17: #{compgcn_forward.3} parent=1 // pred_fallthru
      _
    // Predicated region
    $region18: #{compgcn_forward.3} parent=1 // pred_check
      _
    $region19: #{compgcn_forward.3} parent=1 // pred_check_branch
      %29 = sbr.rel (0) target = $region21
    $region20: #{compgcn_forward.3} parent=1 // pred_region
      _
    $region21: #{compgcn_forward.3} parent=1 // pred_fallthru
      _
    // Predicated region
    $region22: #{compgcn_forward.3} parent=1 // pred_check
      _
    $region23: #{compgcn_forward.3} parent=1 // pred_check_branch
      %31 = sbr.rel (0) target = $region25
    $region24: #{compgcn_forward.3} parent=1 // pred_region
      _
    $region25: #{compgcn_forward.3} parent=1 // pred_fallthru
      _
    // Predicated region
    $region26: #{compgcn_forward.3} parent=1 // pred_check
      _
    $region27: #{compgcn_forward.3} parent=1 // pred_check_branch
      %33 = sbr.rel (0) target = $region29
    $region28: #{compgcn_forward.3} parent=1 // pred_region
      _
    $region29: #{compgcn_forward.3} parent=1 // pred_fallthru
      _
    // Predicated region
    $region30: #{compgcn_forward.3} parent=1 // pred_check
      _
    $region31: #{compgcn_forward.3} parent=1 // pred_check_branch
      %35 = sbr.rel (0) target = $region33
    $region32: #{compgcn_forward.3} parent=1 // pred_region
      _
    $region33: #{compgcn_forward.3} parent=1 // pred_fallthru
      _
    // Predicated region
    $region34: #{compgcn_forward.3} parent=1 // pred_check
      _
    $region35: #{compgcn_forward.3} parent=1 // pred_check_branch
      %37 = sbr.rel (0) target = $region37
    $region36: #{compgcn_forward.3} parent=1 // pred_region
      _
    $region37: #{compgcn_forward.3} parent=1 // pred_fallthru
      _
    // Predicated region
    $region38: #{compgcn_forward.3} parent=1 // pred_check
      _
    $region39: #{compgcn_forward.3} parent=1 // pred_check_branch
      %39 = sbr.rel (0) target = $region41
    $region40: #{compgcn_forward.3} parent=1 // pred_region
      _
    $region41: #{compgcn_forward.3} parent=1 // pred_fallthru
      _
    // Predicated region
    $region42: #{compgcn_forward.3} parent=1 // pred_check
      _
    $region43: #{compgcn_forward.3} parent=1 // pred_check_branch
      %41 = sbr.rel (0) target = $region45
    $region44: #{compgcn_forward.3} parent=1 // pred_region
      _
    $region45: #{compgcn_forward.3} parent=1 // pred_fallthru
      _
    // Predicated region
    $region46: #{compgcn_forward.3} parent=1 // pred_check
      _
    $region47: #{compgcn_forward.3} parent=1 // pred_check_branch
      %43 = sbr.rel (0) target = $region49
    $region48: #{compgcn_forward.3} parent=1 // pred_region
      _
    $region49: #{compgcn_forward.3} parent=1 // pred_fallthru
      _
    // Predicated region
    $region50: #{compgcn_forward.3} parent=1 // pred_check
      _
    $region51: #{compgcn_forward.3} parent=1 // pred_check_branch
      %45 = sbr.rel (0) target = $region53
    $region52: #{compgcn_forward.3} parent=1 // pred_region
      _
    $region53: #{compgcn_forward.3} parent=1 // pred_fallthru
      _
    // Predicated region
    $region54: #{compgcn_forward.3} parent=1 // pred_check
      _
    $region55: #{compgcn_forward.3} parent=1 // pred_check_branch
      %47 = sbr.rel (0) target = $region57
    $region56: #{compgcn_forward.3} parent=1 // pred_region
      _
    $region57: #{compgcn_forward.3} parent=1 // pred_fallthru
      _
    %v49 = vld [vmem:[%s0] sm:$0xf]
    %v50 = vld [vmem:[%s0 + $0x4] sm:$0xf]
    %v51 = vld [vmem:[%s0 + $0x8] sm:$0xf]
    %v52 = vld [vmem:[%s0 + $0xc] sm:$0xf]
    %v53 = vld [vmem:[%s0 + $0x10] sm:$0xf]
    %v54 = vld [vmem:[%s0 + $0x14] sm:$0xf]
    %v55 = vld [vmem:[%s0 + $0x18] sm:$0xf]
    %v56 = vld [vmem:[%s0 + $0x1c] sm:$0xf]
    %v57 = vld [vmem:[%s2] sm:$0xf]
    %v58 = vld [vmem:[%s2 + $0x4] sm:$0xf]
    %v59 = vld [vmem:[%s2 + $0x8] sm:$0xf]
    %v60 = vld [vmem:[%s2 + $0xc] sm:$0xf]
    %v61 = vld [vmem:[%s2 + $0x10] sm:$0xf]
    %v62 = vld [vmem:[%s2 + $0x14] sm:$0xf]
    %v63 = vld [vmem:[%s2 + $0x18] sm:$0xf]
    %v64 = vld [vmem:[%s2 + $0x1c] sm:$0xf]
    %v73 = vunpack.c.l.b16 %v49
    %v74 = vunpack.c.l.b16 %v50
    %v75 = vunpack.c.l.b16 %v51
    %v76 = vunpack.c.l.b16 %v52
    %v77 = vunpack.c.l.b16 %v53
    %v78 = vunpack.c.l.b16 %v54
    %v79 = vunpack.c.l.b16 %v55
    %v80 = vunpack.c.l.b16 %v56
    %v81 = vpack.c.b16 %v74, %v73
    %v82 = vpack.c.b16 %v76, %v75
    %v83 = vpack.c.b16 %v78, %v77
    %v84 = vpack.c.b16 %v80, %v79
    %v93 = vunpack.c.l.b16 %v57
    %v94 = vunpack.c.l.b16 %v58
    %v95 = vunpack.c.l.b16 %v59
    %v96 = vunpack.c.l.b16 %v60
    %v97 = vunpack.c.l.b16 %v61
    %v98 = vunpack.c.l.b16 %v62
    %v99 = vunpack.c.l.b16 %v63
    %v100 = vunpack.c.l.b16 %v64
    %v101 = vpack.c.b16 %v94, %v93
    %v102 = vpack.c.b16 %v96, %v95
    %v103 = vpack.c.b16 %v98, %v97
    %v104 = vpack.c.b16 %v100, %v99
    %vm109 = vcmask 523264
    %v111 = vsel %vm109, %v81, 0
    %v114 = vsel %vm109, %v82, 0
    %v117 = vsel %vm109, %v83, 0
    %v120 = vsel %vm109, %v84, 0
    %122 = vmatpush.bf16.msra.mxu0 0
    %123 = vmatpush.bf16.msra.mxu0 0
    %124 = vmatpush.bf16.msra.mxu0 0
    %125 = vmatpush.bf16.msra.mxu0 0
    %126 = vmatpush.bf16.msra.mxu0 %v104
    %127 = vmatpush.bf16.msra.mxu0 %v103
    %128 = vmatpush.bf16.msra.mxu0 %v102
    %129 = vmatpush.bf16.msra.mxu0 %v101
    %130 = vmatmul.bf16.gmra.mxu0 %v111
    %v131 = vpop.f32.mrf.mxu0
    %v132 = vadd.f32 0.0, %v131
    %v133 = vpop.f32.mrf.mxu0
    %v134 = vadd.f32 0.0, %v133
    %135 = vmatmul.bf16.gmra.mxu0 %v114
    %v136 = vpop.f32.mrf.mxu0
    %v137 = vadd.f32 0.0, %v136
    %v138 = vpop.f32.mrf.mxu0
    %v139 = vadd.f32 0.0, %v138
    %140 = vmatmul.bf16.gmra.mxu0 %v117
    %v141 = vpop.f32.mrf.mxu0
    %v142 = vadd.f32 0.0, %v141
    %v143 = vpop.f32.mrf.mxu0
    %v144 = vadd.f32 0.0, %v143
    %145 = vmatmul.bf16.gmra.mxu0 %v120
    %v146 = vpop.f32.mrf.mxu0
    %v147 = vadd.f32 0.0, %v146
    %v148 = vpop.f32.mrf.mxu0
    %v149 = vadd.f32 0.0, %v148
    %150 = vdwg.mxu0
    %v151 = vld [vmem:[%s3] sm:$0xff]
    %v152 = vld [vmem:[%s3 + $0x8] sm:$0xff]
    %v153 = vld [vmem:[%s3 + $0x10] sm:$0xff]
    %v154 = vld [vmem:[%s3 + $0x18] sm:$0xff]
    %v155 = vld [vmem:[%s3 + $0x20] sm:$0xff]
    %v156 = vld [vmem:[%s3 + $0x28] sm:$0xff]
    %v157 = vld [vmem:[%s3 + $0x30] sm:$0xff]
    %v158 = vld [vmem:[%s3 + $0x38] sm:$0xff]
    %v159 = vsub.f32 %v132, %v151
    %v160 = vsub.f32 %v134, %v152
    %v161 = vsub.f32 %v137, %v153
    %v162 = vsub.f32 %v139, %v154
    %v163 = vsub.f32 %v142, %v155
    %v164 = vsub.f32 %v144, %v156
    %v165 = vsub.f32 %v147, %v157
    %v166 = vsub.f32 %v149, %v158
    %v167 = vld [vmem:[%s9] sm:$0xff]
    %v168 = vld [vmem:[%s9 + $0x8] sm:$0xff]
    %v169 = vld [vmem:[%s9 + $0x10] sm:$0xff]
    %v170 = vld [vmem:[%s9 + $0x18] sm:$0xff]
    %v171 = vld [vmem:[%s9 + $0x20] sm:$0xff]
    %v172 = vld [vmem:[%s9 + $0x28] sm:$0xff]
    %v173 = vld [vmem:[%s9 + $0x30] sm:$0xff]
    %v174 = vld [vmem:[%s9 + $0x38] sm:$0xff]
    %176 = vset.pattern.permute.xlu0 0
    %177 = vperm.xlu0 %176, %v167
    %v178 = vpop.permute.xlu0 %177
    %181 = vset.pattern.permute.xlu0 0
    %182 = vperm.xlu0 %181, %v168
    %v183 = vpop.permute.xlu0 %182
    %186 = vset.pattern.permute.xlu0 0
    %187 = vperm.xlu0 %186, %v169
    %v188 = vpop.permute.xlu0 %187
    %191 = vset.pattern.permute.xlu0 0
    %192 = vperm.xlu0 %191, %v170
    %v193 = vpop.permute.xlu0 %192
    %196 = vset.pattern.permute.xlu0 0
    %197 = vperm.xlu0 %196, %v171
    %v198 = vpop.permute.xlu0 %197
    %201 = vset.pattern.permute.xlu0 0
    %202 = vperm.xlu0 %201, %v172
    %v203 = vpop.permute.xlu0 %202
    %206 = vset.pattern.permute.xlu0 0
    %207 = vperm.xlu0 %206, %v173
    %v208 = vpop.permute.xlu0 %207
    %211 = vset.pattern.permute.xlu0 0
    %212 = vperm.xlu0 %211, %v174
    %v213 = vpop.permute.xlu0 %212
    %v215 = vmul.f32 %v159, %v178
    %v216 = vmul.f32 %v160, %v183
    %v217 = vmul.f32 %v161, %v188
    %v218 = vmul.f32 %v162, %v193
    %v219 = vmul.f32 %v163, %v198
    %v220 = vmul.f32 %v164, %v203
    %v221 = vmul.f32 %v165, %v208
    %v222 = vmul.f32 %v166, %v213
    %v223 = vpack.c.bf16 %v216, %v215
    %v224 = vpack.c.bf16 %v218, %v217
    %v225 = vpack.c.bf16 %v220, %v219
    %v226 = vpack.c.bf16 %v222, %v221
    %v227 = vld [vmem:[%s6] sm:$0xf]
    %v228 = vld [vmem:[%s6 + $0x4] sm:$0xf]
    %v229 = vld [vmem:[%s6 + $0x8] sm:$0xf]
    %v230 = vld [vmem:[%s6 + $0xc] sm:$0xf]
    %v231 = vld [vmem:[%s6 + $0x10] sm:$0xf]
    %v232 = vld [vmem:[%s6 + $0x14] sm:$0xf]
    %v233 = vld [vmem:[%s6 + $0x18] sm:$0xf]
    %v234 = vld [vmem:[%s6 + $0x1c] sm:$0xf]
    %v235 = vld [vmem:[%s6 + $0x20] sm:$0xf]
    %v236 = vld [vmem:[%s6 + $0x24] sm:$0xf]
    %v237 = vld [vmem:[%s6 + $0x28] sm:$0xf]
    %v238 = vld [vmem:[%s6 + $0x2c] sm:$0xf]
    %v239 = vld [vmem:[%s6 + $0x30] sm:$0xf]
    %v240 = vld [vmem:[%s6 + $0x34] sm:$0xf]
    %v241 = vld [vmem:[%s6 + $0x38] sm:$0xf]
    %v242 = vld [vmem:[%s6 + $0x3c] sm:$0xf]
    %v243 = vld [vmem:[%s1] sm:$0xf]
    %v244 = vld [vmem:[%s1 + $0x4] sm:$0xf]
    %v245 = vld [vmem:[%s1 + $0x8] sm:$0xf]
    %v246 = vld [vmem:[%s1 + $0xc] sm:$0xf]
    %v247 = vld [vmem:[%s1 + $0x10] sm:$0xf]
    %v248 = vld [vmem:[%s1 + $0x14] sm:$0xf]
    %v249 = vld [vmem:[%s1 + $0x18] sm:$0xf]
    %v250 = vld [vmem:[%s1 + $0x1c] sm:$0xf]
    %v259 = vunpack.c.l.b16 %v243
    %v260 = vunpack.c.l.b16 %v244
    %v261 = vunpack.c.l.b16 %v245
    %v262 = vunpack.c.l.b16 %v246
    %v263 = vunpack.c.l.b16 %v247
    %v264 = vunpack.c.l.b16 %v248
    %v265 = vunpack.c.l.b16 %v249
    %v266 = vunpack.c.l.b16 %v250
    %v267 = vpack.c.b16 %v260, %v259
    %v268 = vpack.c.b16 %v262, %v261
    %v269 = vpack.c.b16 %v264, %v263
    %v270 = vpack.c.b16 %v266, %v265
    %v272 = vsel %vm109, %v267, 0
    %v275 = vsel %vm109, %v268, 0
    %v278 = vsel %vm109, %v269, 0
    %v281 = vsel %vm109, %v270, 0
    %283 = vmatpush.bf16.msra.mxu0 0
    %284 = vmatpush.bf16.msra.mxu0 0
    %285 = vmatpush.bf16.msra.mxu0 0
    %286 = vmatpush.bf16.msra.mxu0 0
    %287 = vmatpush.bf16.msra.mxu0 %v104
    %288 = vmatpush.bf16.msra.mxu0 %v103
    %289 = vmatpush.bf16.msra.mxu0 %v102
    %290 = vmatpush.bf16.msra.mxu0 %v101
    %291 = vmatmul.bf16.gmra.mxu0 %v272
    %v292 = vpop.f32.mrf.mxu0
    %v293 = vadd.f32 0.0, %v292
    %v294 = vpop.f32.mrf.mxu0
    %v295 = vadd.f32 0.0, %v294
    %296 = vmatmul.bf16.gmra.mxu0 %v275
    %v297 = vpop.f32.mrf.mxu0
    %v298 = vadd.f32 0.0, %v297
    %v299 = vpop.f32.mrf.mxu0
    %v300 = vadd.f32 0.0, %v299
    %301 = vmatmul.bf16.gmra.mxu0 %v278
    %v302 = vpop.f32.mrf.mxu0
    %v303 = vadd.f32 0.0, %v302
    %v304 = vpop.f32.mrf.mxu0
    %v305 = vadd.f32 0.0, %v304
    %306 = vmatmul.bf16.gmra.mxu0 %v281
    %v307 = vpop.f32.mrf.mxu0
    %v308 = vadd.f32 0.0, %v307
    %v309 = vpop.f32.mrf.mxu0
    %v310 = vadd.f32 0.0, %v309
    %311 = vdwg.mxu0
    %v312 = vld [vmem:[%s4] sm:$0xff]
    %v313 = vld [vmem:[%s4 + $0x8] sm:$0xff]
    %v314 = vld [vmem:[%s4 + $0x10] sm:$0xff]
    %v315 = vld [vmem:[%s4 + $0x18] sm:$0xff]
    %v316 = vld [vmem:[%s4 + $0x20] sm:$0xff]
    %v317 = vld [vmem:[%s4 + $0x28] sm:$0xff]
    %v318 = vld [vmem:[%s4 + $0x30] sm:$0xff]
    %v319 = vld [vmem:[%s4 + $0x38] sm:$0xff]
    %v320 = vsub.f32 %v293, %v312
    %v321 = vsub.f32 %v295, %v313
    %v322 = vsub.f32 %v298, %v314
    %v323 = vsub.f32 %v300, %v315
    %v324 = vsub.f32 %v303, %v316
    %v325 = vsub.f32 %v305, %v317
    %v326 = vsub.f32 %v308, %v318
    %v327 = vsub.f32 %v310, %v319
    %v328 = vld [vmem:[%s10] sm:$0xff]
    %v329 = vld [vmem:[%s10 + $0x8] sm:$0xff]
    %v330 = vld [vmem:[%s10 + $0x10] sm:$0xff]
    %v331 = vld [vmem:[%s10 + $0x18] sm:$0xff]
    %v332 = vld [vmem:[%s10 + $0x20] sm:$0xff]
    %v333 = vld [vmem:[%s10 + $0x28] sm:$0xff]
    %v334 = vld [vmem:[%s10 + $0x30] sm:$0xff]
    %v335 = vld [vmem:[%s10 + $0x38] sm:$0xff]
    %337 = vset.pattern.permute.xlu0 0
    %338 = vperm.xlu0 %337, %v328
    %v339 = vpop.permute.xlu0 %338
    %342 = vset.pattern.permute.xlu0 0
    %343 = vperm.xlu0 %342, %v329
    %v344 = vpop.permute.xlu0 %343
    %347 = vset.pattern.permute.xlu0 0
    %348 = vperm.xlu0 %347, %v330
    %v349 = vpop.permute.xlu0 %348
    %352 = vset.pattern.permute.xlu0 0
    %353 = vperm.xlu0 %352, %v331
    %v354 = vpop.permute.xlu0 %353
    %357 = vset.pattern.permute.xlu0 0
    %358 = vperm.xlu0 %357, %v332
    %v359 = vpop.permute.xlu0 %358
    %362 = vset.pattern.permute.xlu0 0
    %363 = vperm.xlu0 %362, %v333
    %v364 = vpop.permute.xlu0 %363
    %367 = vset.pattern.permute.xlu0 0
    %368 = vperm.xlu0 %367, %v334
    %v369 = vpop.permute.xlu0 %368
    %372 = vset.pattern.permute.xlu0 0
    %373 = vperm.xlu0 %372, %v335
    %v374 = vpop.permute.xlu0 %373
    %v376 = vmul.f32 %v320, %v339
    %v377 = vmul.f32 %v321, %v344
    %v378 = vmul.f32 %v322, %v349
    %v379 = vmul.f32 %v323, %v354
    %v380 = vmul.f32 %v324, %v359
    %v381 = vmul.f32 %v325, %v364
    %v382 = vmul.f32 %v326, %v369
    %v383 = vmul.f32 %v327, %v374
    %v384 = vpack.c.bf16 %v377, %v376
    %v385 = vpack.c.bf16 %v379, %v378
    %v386 = vpack.c.bf16 %v381, %v380
    %v387 = vpack.c.bf16 %v383, %v382
    %v388 = vld [vmem:[%s7] sm:$0xf]
    %v389 = vld [vmem:[%s7 + $0x4] sm:$0xf]
    %v390 = vld [vmem:[%s7 + $0x8] sm:$0xf]
    %v391 = vld [vmem:[%s7 + $0xc] sm:$0xf]
    %v392 = vld [vmem:[%s7 + $0x10] sm:$0xf]
    %v393 = vld [vmem:[%s7 + $0x14] sm:$0xf]
    %v394 = vld [vmem:[%s7 + $0x18] sm:$0xf]
    %v395 = vld [vmem:[%s7 + $0x1c] sm:$0xf]
    %v396 = vld [vmem:[%s7 + $0x20] sm:$0xf]
    %v397 = vld [vmem:[%s7 + $0x24] sm:$0xf]
    %v398 = vld [vmem:[%s7 + $0x28] sm:$0xf]
    %v399 = vld [vmem:[%s7 + $0x2c] sm:$0xf]
    %v400 = vld [vmem:[%s7 + $0x30] sm:$0xf]
    %v401 = vld [vmem:[%s7 + $0x34] sm:$0xf]
    %v402 = vld [vmem:[%s7 + $0x38] sm:$0xf]
    %v403 = vld [vmem:[%s7 + $0x3c] sm:$0xf]
    %v420 = vunpack.c.l.b16 %v388
    %v421 = vunpack.c.l.b16 %v389
    %v422 = vunpack.c.l.b16 %v390
    %v423 = vunpack.c.l.b16 %v391
    %v424 = vunpack.c.l.b16 %v392
    %v425 = vunpack.c.l.b16 %v393
    %v426 = vunpack.c.l.b16 %v394
    %v427 = vunpack.c.l.b16 %v395
    %v428 = vunpack.c.l.b16 %v396
    %v429 = vunpack.c.l.b16 %v397
    %v430 = vunpack.c.l.b16 %v398
    %v431 = vunpack.c.l.b16 %v399
    %v432 = vunpack.c.l.b16 %v400
    %v433 = vunpack.c.l.b16 %v401
    %v434 = vunpack.c.l.b16 %v402
    %v435 = vunpack.c.l.b16 %v403
    %v436 = vpack.c.b16 %v421, %v420
    %v437 = vpack.c.b16 %v423, %v422
    %v438 = vpack.c.b16 %v425, %v424
    %v439 = vpack.c.b16 %v427, %v426
    %v440 = vpack.c.b16 %v429, %v428
    %v441 = vpack.c.b16 %v431, %v430
    %v442 = vpack.c.b16 %v433, %v432
    %v443 = vpack.c.b16 %v435, %v434
    %452 = vmatpush.bf16.msra.mxu0 %v443
    %453 = vmatpush.bf16.msra.mxu0 %v442
    %454 = vmatpush.bf16.msra.mxu0 %v441
    %455 = vmatpush.bf16.msra.mxu0 %v440
    %456 = vmatpush.bf16.msra.mxu0 %v439
    %457 = vmatpush.bf16.msra.mxu0 %v438
    %458 = vmatpush.bf16.msra.mxu0 %v437
    %459 = vmatpush.bf16.msra.mxu0 %v436
    %460 = vmatmul.bf16.gmra.mxu0 %v384
    %v461 = vpop.f32.mrf.mxu0
    %v462 = vadd.f32 0.0, %v461
    %v463 = vpop.f32.mrf.mxu0
    %v464 = vadd.f32 0.0, %v463
    %465 = vmatmul.bf16.gmra.mxu0 %v385
    %v466 = vpop.f32.mrf.mxu0
    %v467 = vadd.f32 0.0, %v466
    %v468 = vpop.f32.mrf.mxu0
    %v469 = vadd.f32 0.0, %v468
    %470 = vmatmul.bf16.gmra.mxu0 %v386
    %v471 = vpop.f32.mrf.mxu0
    %v472 = vadd.f32 0.0, %v471
    %v473 = vpop.f32.mrf.mxu0
    %v474 = vadd.f32 0.0, %v473
    %475 = vmatmul.bf16.gmra.mxu0 %v387
    %v476 = vpop.f32.mrf.mxu0
    %v477 = vadd.f32 0.0, %v476
    %v478 = vpop.f32.mrf.mxu0
    %v479 = vadd.f32 0.0, %v478
    %480 = vdwg.mxu0
    %v481 = vunpack.c.l.bf16 %v57
    %v482 = vunpack.c.l.bf16 %v58
    %v483 = vunpack.c.l.bf16 %v59
    %v484 = vunpack.c.l.bf16 %v60
    %v485 = vunpack.c.l.bf16 %v61
    %v486 = vunpack.c.l.bf16 %v62
    %v487 = vunpack.c.l.bf16 %v63
    %v488 = vunpack.c.l.bf16 %v64
    %v489 = vld [vmem:[%s5] sm:$0x1]
    %v491 = vperm.slane %v489, 0
    %v493 = vsub.f32 %v481, %v491
    %v494 = vsub.f32 %v482, %v491
    %v495 = vsub.f32 %v483, %v491
    %v496 = vsub.f32 %v484, %v491
    %v497 = vsub.f32 %v485, %v491
    %v498 = vsub.f32 %v486, %v491
    %v499 = vsub.f32 %v487, %v491
    %v500 = vsub.f32 %v488, %v491
    %v501 = vpack.c.bf16 %v494, %v493
    %v502 = vpack.c.bf16 %v496, %v495
    %v503 = vpack.c.bf16 %v498, %v497
    %v504 = vpack.c.bf16 %v500, %v499
    %v505 = vld [vmem:[%s8] sm:$0xf]
    %v506 = vld [vmem:[%s8 + $0x4] sm:$0xf]
    %v507 = vld [vmem:[%s8 + $0x8] sm:$0xf]
    %v508 = vld [vmem:[%s8 + $0xc] sm:$0xf]
    %v509 = vld [vmem:[%s8 + $0x10] sm:$0xf]
    %v510 = vld [vmem:[%s8 + $0x14] sm:$0xf]
    %v511 = vld [vmem:[%s8 + $0x18] sm:$0xf]
    %v512 = vld [vmem:[%s8 + $0x1c] sm:$0xf]
    %v513 = vld [vmem:[%s8 + $0x20] sm:$0xf]
    %v514 = vld [vmem:[%s8 + $0x24] sm:$0xf]
    %v515 = vld [vmem:[%s8 + $0x28] sm:$0xf]
    %v516 = vld [vmem:[%s8 + $0x2c] sm:$0xf]
    %v517 = vld [vmem:[%s8 + $0x30] sm:$0xf]
    %v518 = vld [vmem:[%s8 + $0x34] sm:$0xf]
    %v519 = vld [vmem:[%s8 + $0x38] sm:$0xf]
    %v520 = vld [vmem:[%s8 + $0x3c] sm:$0xf]
    %v537 = vunpack.c.l.b16 %v505
    %v538 = vunpack.c.l.b16 %v506
    %v539 = vunpack.c.l.b16 %v507
    %v540 = vunpack.c.l.b16 %v508
    %v541 = vunpack.c.l.b16 %v509
    %v542 = vunpack.c.l.b16 %v510
    %v543 = vunpack.c.l.b16 %v511
    %v544 = vunpack.c.l.b16 %v512
    %v545 = vunpack.c.l.b16 %v513
    %v546 = vunpack.c.l.b16 %v514
    %v547 = vunpack.c.l.b16 %v515
    %v548 = vunpack.c.l.b16 %v516
    %v549 = vunpack.c.l.b16 %v517
    %v550 = vunpack.c.l.b16 %v518
    %v551 = vunpack.c.l.b16 %v519
    %v552 = vunpack.c.l.b16 %v520
    %v553 = vpack.c.b16 %v538, %v537
    %v554 = vpack.c.b16 %v540, %v539
    %v555 = vpack.c.b16 %v542, %v541
    %v556 = vpack.c.b16 %v544, %v543
    %v557 = vpack.c.b16 %v546, %v545
    %v558 = vpack.c.b16 %v548, %v547
    %v559 = vpack.c.b16 %v550, %v549
    %v560 = vpack.c.b16 %v552, %v551
    %569 = vmatpush.bf16.msra.mxu0 %v560
    %570 = vmatpush.bf16.msra.mxu0 %v559
    %571 = vmatpush.bf16.msra.mxu0 %v558
    %572 = vmatpush.bf16.msra.mxu0 %v557
    %573 = vmatpush.bf16.msra.mxu0 %v556
    %574 = vmatpush.bf16.msra.mxu0 %v555
    %575 = vmatpush.bf16.msra.mxu0 %v554
    %576 = vmatpush.bf16.msra.mxu0 %v553
    %577 = vmatmul.bf16.gmra.mxu0 %v501
    %v578 = vpop.f32.mrf.mxu0
    %v579 = vadd.f32 0.0, %v578
    %v580 = vpop.f32.mrf.mxu0
    %v581 = vadd.f32 0.0, %v580
    %582 = vmatmul.bf16.gmra.mxu0 %v502
    %v583 = vpop.f32.mrf.mxu0
    %v584 = vadd.f32 0.0, %v583
    %v585 = vpop.f32.mrf.mxu0
    %v586 = vadd.f32 0.0, %v585
    %587 = vmatmul.bf16.gmra.mxu0 %v503
    %v588 = vpop.f32.mrf.mxu0
    %v589 = vadd.f32 0.0, %v588
    %v590 = vpop.f32.mrf.mxu0
    %v591 = vadd.f32 0.0, %v590
    %592 = vmatmul.bf16.gmra.mxu0 %v504
    %v593 = vpop.f32.mrf.mxu0
    %v594 = vadd.f32 0.0, %v593
    %v595 = vpop.f32.mrf.mxu0
    %v596 = vadd.f32 0.0, %v595
    %597 = vdwg.mxu0
    %v614 = vunpack.c.l.b16 %v227
    %v615 = vunpack.c.l.b16 %v228
    %v616 = vunpack.c.l.b16 %v229
    %v617 = vunpack.c.l.b16 %v230
    %v618 = vunpack.c.l.b16 %v231
    %v619 = vunpack.c.l.b16 %v232
    %v620 = vunpack.c.l.b16 %v233
    %v621 = vunpack.c.l.b16 %v234
    %v622 = vunpack.c.l.b16 %v235
    %v623 = vunpack.c.l.b16 %v236
    %v624 = vunpack.c.l.b16 %v237
    %v625 = vunpack.c.l.b16 %v238
    %v626 = vunpack.c.l.b16 %v239
    %v627 = vunpack.c.l.b16 %v240
    %v628 = vunpack.c.l.b16 %v241
    %v629 = vunpack.c.l.b16 %v242
    %v630 = vpack.c.b16 %v615, %v614
    %v631 = vpack.c.b16 %v617, %v616
    %v632 = vpack.c.b16 %v619, %v618
    %v633 = vpack.c.b16 %v621, %v620
    %v634 = vpack.c.b16 %v623, %v622
    %v635 = vpack.c.b16 %v625, %v624
    %v636 = vpack.c.b16 %v627, %v626
    %v637 = vpack.c.b16 %v629, %v628
    %646 = vmatpush.bf16.msra.mxu0 %v637
    %647 = vmatpush.bf16.msra.mxu0 %v636
    %648 = vmatpush.bf16.msra.mxu0 %v635
    %649 = vmatpush.bf16.msra.mxu0 %v634
    %650 = vmatpush.bf16.msra.mxu0 %v633
    %651 = vmatpush.bf16.msra.mxu0 %v632
    %652 = vmatpush.bf16.msra.mxu0 %v631
    %653 = vmatpush.bf16.msra.mxu0 %v630
    %654 = vmatmul.bf16.gmra.mxu0 %v223
    %v655 = vpop.f32.mrf.mxu0
    %v656 = vadd.f32 %v462, %v655
    %v657 = vpop.f32.mrf.mxu0
    %v658 = vadd.f32 %v464, %v657
    %659 = vmatmul.bf16.gmra.mxu0 %v224
    %v660 = vpop.f32.mrf.mxu0
    %v661 = vadd.f32 %v467, %v660
    %v662 = vpop.f32.mrf.mxu0
    %v663 = vadd.f32 %v469, %v662
    %664 = vmatmul.bf16.gmra.mxu0 %v225
    %v665 = vpop.f32.mrf.mxu0
    %v666 = vadd.f32 %v472, %v665
    %v667 = vpop.f32.mrf.mxu0
    %v668 = vadd.f32 %v474, %v667
    %669 = vmatmul.bf16.gmra.mxu0 %v226
    %v670 = vpop.f32.mrf.mxu0
    %v671 = vadd.f32 %v477, %v670
    %v672 = vpop.f32.mrf.mxu0
    %v673 = vadd.f32 %v479, %v672
    %674 = vdwg.mxu0
    %v675 = vadd.f32 %v656, %v579
    %v676 = vadd.f32 %v658, %v581
    %v677 = vadd.f32 %v661, %v584
    %v678 = vadd.f32 %v663, %v586
    %v679 = vadd.f32 %v666, %v589
    %v680 = vadd.f32 %v668, %v591
    %v681 = vadd.f32 %v671, %v594
    %v682 = vadd.f32 %v673, %v596
    %v683 = vmul.f32 %v675, 0.33333334
    %v684 = vmul.f32 %v676, 0.33333334
    %v685 = vmul.f32 %v677, 0.33333334
    %v686 = vmul.f32 %v678, 0.33333334
    %v687 = vmul.f32 %v679, 0.33333334
    %v688 = vmul.f32 %v680, 0.33333334
    %v689 = vmul.f32 %v681, 0.33333334
    %v690 = vmul.f32 %v682, 0.33333334
    %v691 = vld [vmem:[%s11] sm:$0x1]
    %v693 = vperm.slane %v691, 0
    %v695 = vadd.f32 %v683, %v693
    %v696 = vadd.f32 %v684, %v693
    %v697 = vadd.f32 %v685, %v693
    %v698 = vadd.f32 %v686, %v693
    %v699 = vadd.f32 %v687, %v693
    %v700 = vadd.f32 %v688, %v693
    %v701 = vadd.f32 %v689, %v693
    %v702 = vadd.f32 %v690, %v693
    %v703 = vadd.f32 %v695, %v696
    %v704 = vadd.f32 %v703, %v697
    %v705 = vadd.f32 %v704, %v698
    %v706 = vadd.f32 %v705, %v699
    %v707 = vadd.f32 %v706, %v700
    %v708 = vadd.f32 %v707, %v701
    %v709 = vadd.f32 %v708, %v702
    %v710 = vrot.slane %v709, 4
    %v711 = vadd.f32 %v709, %v710
    %v712 = vrot.slane %v711, 2
    %v713 = vadd.f32 %v711, %v712
    %v714 = vrot.slane %v713, 1
    %v715 = vadd.f32 %v713, %v714
    %v716 = vrcp.pop 64.0
    %v717 = vmul.f32 64.0, %v716
    %v718 = vsub.f32 1.0, %v717
    %v719 = vmul.f32 %v716, %v718
    %v720 = vadd.f32 %v716, %v719
    %vm721 = vweird.f32 %v716
    %v722 = vsel %vm721, %v716, %v720
    %v723 = vmul.f32 %v715, %v722
    %v724 = vsub.f32 %v695, %v723
    %v725 = vsub.f32 %v696, %v723
    %v726 = vsub.f32 %v697, %v723
    %v727 = vsub.f32 %v698, %v723
    %v728 = vsub.f32 %v699, %v723
    %v729 = vsub.f32 %v700, %v723
    %v730 = vsub.f32 %v701, %v723
    %v731 = vsub.f32 %v702, %v723
    %v732 = vmul.f32 %v724, %v724
    %v733 = vmul.f32 %v725, %v725
    %v734 = vmul.f32 %v726, %v726
    %v735 = vmul.f32 %v727, %v727
    %v736 = vmul.f32 %v728, %v728
    %v737 = vmul.f32 %v729, %v729
    %v738 = vmul.f32 %v730, %v730
    %v739 = vmul.f32 %v731, %v731
    %v740 = vadd.f32 %v732, %v733
    %v741 = vadd.f32 %v740, %v734
    %v742 = vadd.f32 %v741, %v735
    %v743 = vadd.f32 %v742, %v736
    %v744 = vadd.f32 %v743, %v737
    %v745 = vadd.f32 %v744, %v738
    %v746 = vadd.f32 %v745, %v739
    %v747 = vrot.slane %v746, 4
    %v748 = vadd.f32 %v746, %v747
    %v749 = vrot.slane %v748, 2
    %v750 = vadd.f32 %v748, %v749
    %v751 = vrot.slane %v750, 1
    %v752 = vadd.f32 %v750, %v751
    %v753 = vmul.f32 %v752, %v722
    %v754 = vadd.f32 %v753, 1e-05
    %v755 = vrsqrt.pop %v754
    %v756 = vmul.f32 %v755, %v754
    %v757 = vmul.f32 %v756, %v755
    %v758 = vmul.f32 0.5, %v757
    %v759 = vsub.f32 1.5, %v758
    %v760 = vmul.f32 %v755, %v759
    %vm761 = vweird.f32 %v754
    %vm762 = vweird.f32 %v755
    %vm763 = vmor %vm761, %vm762
    %v764 = vsel %vm763, %v755, %v760
    %v765 = vmul.f32 %v724, %v764
    %v766 = vmul.f32 %v725, %v764
    %v767 = vmul.f32 %v726, %v764
    %v768 = vmul.f32 %v727, %v764
    %v769 = vmul.f32 %v728, %v764
    %v770 = vmul.f32 %v729, %v764
    %v771 = vmul.f32 %v730, %v764
    %v772 = vmul.f32 %v731, %v764
    %v773 = vld [vmem:[%s12] sm:$0x1]
    %v775 = vperm.slane %v773, 0
    %v777 = vmul.f32 %v765, %v775
    %v778 = vmul.f32 %v766, %v775
    %v779 = vmul.f32 %v767, %v775
    %v780 = vmul.f32 %v768, %v775
    %v781 = vmul.f32 %v769, %v775
    %v782 = vmul.f32 %v770, %v775
    %v783 = vmul.f32 %v771, %v775
    %v784 = vmul.f32 %v772, %v775
    %v785 = vld [vmem:[%s13] sm:$0x1]
    %v787 = vperm.slane %v785, 0
    %v789 = vadd.f32 %v777, %v787
    %v790 = vadd.f32 %v778, %v787
    %v791 = vadd.f32 %v779, %v787
    %v792 = vadd.f32 %v780, %v787
    %v793 = vadd.f32 %v781, %v787
    %v794 = vadd.f32 %v782, %v787
    %v795 = vadd.f32 %v783, %v787
    %v796 = vadd.f32 %v784, %v787
    %v797 = vmax.f32 %v789, 0.0
    %v798 = vmax.f32 %v790, 0.0
    %v799 = vmax.f32 %v791, 0.0
    %v800 = vmax.f32 %v792, 0.0
    %v801 = vmax.f32 %v793, 0.0
    %v802 = vmax.f32 %v794, 0.0
    %v803 = vmax.f32 %v795, 0.0
    %v804 = vmax.f32 %v796, 0.0
    %805 = vst [vmem:[#allocation2] sm:$0xff] %v797
    %806 = vst [vmem:[#allocation2 + $0x8] sm:$0xff] %v798
    %807 = vst [vmem:[#allocation2 + $0x10] sm:$0xff] %v799
    %808 = vst [vmem:[#allocation2 + $0x18] sm:$0xff] %v800
    %809 = vst [vmem:[#allocation2 + $0x20] sm:$0xff] %v801
    %810 = vst [vmem:[#allocation2 + $0x28] sm:$0xff] %v802
    %811 = vst [vmem:[#allocation2 + $0x30] sm:$0xff] %v803
    %812 = vst [vmem:[#allocation2 + $0x38] sm:$0xff] %v804
    // Predicated region
    $region58: #{compgcn_forward.3} parent=1 // pred_check
      _
    $region59: #{compgcn_forward.3} parent=1 // pred_check_branch
      %814 = sbr.rel (0) target = $region61
    $region60: #{compgcn_forward.3} parent=1 // pred_region
      %816 = vsyncadd [#allocation3], 0
      %s817 = sshll.u32 [#allocation2], 4
      %s818 = int_to_ptr.vmem [resolvable:$true] %s817
      %s819 = sshll.u32 %s14, 4
      %s820 = int_to_ptr.hbm [resolvable:$true] %s819
      %825 = dma.vmem_to_hbm [thread:$0]  %s818, 1024, %s820, [#allocation3], 128, 128, 8
    $region61: #{compgcn_forward.3} parent=1 // pred_fallthru
      _
    // Predicated region
    $region62: #{compgcn_forward.3} parent=1 // pred_check
      _
    $region63: #{compgcn_forward.3} parent=1 // pred_check_branch
      %827 = sbr.rel (0) target = $region65
    $region64: #{compgcn_forward.3} parent=1 // pred_region
      %829 = dma.done [#allocation3], 1024
    $region65: #{compgcn_forward.3} parent=1 // pred_fallthru
      _
    %830 = vsyncpa [#allocation3], 1

// kernel: compgcn_forward.2
$region0: #{compgcn_forward.2}
  #allocation0 [shape = 'u32[]', space=smem, size = 0x4, offset = 0x4, fixed_abs, tag = 'smem constant byte address 0x4 - core index']
  #allocation1 [shape = 'u32[72,128]{1,0:T(1,128)}', space=vmem, size = 0x9000, scoped, tag = 'internal scratch']
  %s0 = inlined_call_operand.vmem [shape: bf16[64,64], index: 0, kind: input, shape index: {}]
  %s1 = inlined_call_operand.vmem [shape: bf16[64,64], index: 1, kind: input, shape index: {}]
  %s2 = inlined_call_operand.vmem [shape: bf16[64,128], index: 2, kind: input, shape index: {}]
  %s3 = inlined_call_operand.vmem [shape: f32[64,128], index: 3, kind: input, shape index: {}]
  %s4 = inlined_call_operand.vmem [shape: f32[64,128], index: 4, kind: input, shape index: {}]
  %s5 = inlined_call_operand.vmem [shape: f32[1,128], index: 5, kind: input, shape index: {}]
  %s6 = inlined_call_operand.vmem [shape: bf16[128,128], index: 6, kind: input, shape index: {}]
  %s7 = inlined_call_operand.vmem [shape: bf16[128,128], index: 7, kind: input, shape index: {}]
  %s8 = inlined_call_operand.vmem [shape: bf16[128,128], index: 8, kind: input, shape index: {}]
  %s9 = inlined_call_operand.vmem [shape: f32[64,1], index: 9, kind: input, shape index: {}]
  %s10 = inlined_call_operand.vmem [shape: f32[64,1], index: 10, kind: input, shape index: {}]
  %s11 = inlined_call_operand.vmem [shape: f32[1,128], index: 11, kind: input, shape index: {}]
  %s12 = inlined_call_operand.vmem [shape: f32[1,128], index: 12, kind: input, shape index: {}]
  %s13 = inlined_call_operand.vmem [shape: f32[1,128], index: 13, kind: input, shape index: {}]
  %s14 = inlined_call_operand.vmem [shape: f32[64,128], index: 14, kind: output, shape index: {}]
  %s15 = sld [smem:[#allocation0]]
  $region66: #{compgcn_forward.2} parent=0
    _
  %s17 = ssub.s32 1, %s15
  %s18 = scalar_select 0, %s17, %s15
  // Predicated region
  $region2: #{compgcn_forward.2} parent=0 // pred_check
    _
  $region3: #{compgcn_forward.2} parent=0 // pred_check_branch
    %20 = sbr.rel (0) target = $region5
  $region4: #{compgcn_forward.2} parent=0 // pred_region
    _
  $region5: #{compgcn_forward.2} parent=0 // pred_fallthru
    _
  // Predicated region
  $region6: #{compgcn_forward.2} parent=0 // pred_check
    _
  $region7: #{compgcn_forward.2} parent=0 // pred_check_branch
    %22 = sbr.rel (0) target = $region9
  $region8: #{compgcn_forward.2} parent=0 // pred_region
    _
  $region9: #{compgcn_forward.2} parent=0 // pred_fallthru
    _
  // Predicated region
  $region10: #{compgcn_forward.2} parent=0 // pred_check
    _
  $region11: #{compgcn_forward.2} parent=0 // pred_check_branch
    %24 = sbr.rel (0) target = $region13
  $region12: #{compgcn_forward.2} parent=0 // pred_region
    _
  $region13: #{compgcn_forward.2} parent=0 // pred_fallthru
    _
  // Predicated region
  $region14: #{compgcn_forward.2} parent=0 // pred_check
    _
  $region15: #{compgcn_forward.2} parent=0 // pred_check_branch
    %26 = sbr.rel (0) target = $region17
  $region16: #{compgcn_forward.2} parent=0 // pred_region
    _
  $region17: #{compgcn_forward.2} parent=0 // pred_fallthru
    _
  // Predicated region
  $region18: #{compgcn_forward.2} parent=0 // pred_check
    _
  $region19: #{compgcn_forward.2} parent=0 // pred_check_branch
    %28 = sbr.rel (0) target = $region21
  $region20: #{compgcn_forward.2} parent=0 // pred_region
    _
  $region21: #{compgcn_forward.2} parent=0 // pred_fallthru
    _
  // Predicated region
  $region22: #{compgcn_forward.2} parent=0 // pred_check
    _
  $region23: #{compgcn_forward.2} parent=0 // pred_check_branch
    %30 = sbr.rel (0) target = $region25
  $region24: #{compgcn_forward.2} parent=0 // pred_region
    _
  $region25: #{compgcn_forward.2} parent=0 // pred_fallthru
    _
  // Predicated region
  $region26: #{compgcn_forward.2} parent=0 // pred_check
    _
  $region27: #{compgcn_forward.2} parent=0 // pred_check_branch
    %32 = sbr.rel (0) target = $region29
  $region28: #{compgcn_forward.2} parent=0 // pred_region
    _
  $region29: #{compgcn_forward.2} parent=0 // pred_fallthru
    _
  // Predicated region
  $region30: #{compgcn_forward.2} parent=0 // pred_check
    _
  $region31: #{compgcn_forward.2} parent=0 // pred_check_branch
    %34 = sbr.rel (0) target = $region33
  $region32: #{compgcn_forward.2} parent=0 // pred_region
    _
  $region33: #{compgcn_forward.2} parent=0 // pred_fallthru
    _
  // Predicated region
  $region34: #{compgcn_forward.2} parent=0 // pred_check
    _
  $region35: #{compgcn_forward.2} parent=0 // pred_check_branch
    %36 = sbr.rel (0) target = $region37
  $region36: #{compgcn_forward.2} parent=0 // pred_region
    _
  $region37: #{compgcn_forward.2} parent=0 // pred_fallthru
    _
  // Predicated region
  $region38: #{compgcn_forward.2} parent=0 // pred_check
    _
  $region39: #{compgcn_forward.2} parent=0 // pred_check_branch
    %38 = sbr.rel (0) target = $region41
  $region40: #{compgcn_forward.2} parent=0 // pred_region
    _
  $region41: #{compgcn_forward.2} parent=0 // pred_fallthru
    _
  // Predicated region
  $region42: #{compgcn_forward.2} parent=0 // pred_check
    _
  $region43: #{compgcn_forward.2} parent=0 // pred_check_branch
    %40 = sbr.rel (0) target = $region45
  $region44: #{compgcn_forward.2} parent=0 // pred_region
    _
  $region45: #{compgcn_forward.2} parent=0 // pred_fallthru
    _
  // Predicated region
  $region46: #{compgcn_forward.2} parent=0 // pred_check
    _
  $region47: #{compgcn_forward.2} parent=0 // pred_check_branch
    %42 = sbr.rel (0) target = $region49
  $region48: #{compgcn_forward.2} parent=0 // pred_region
    _
  $region49: #{compgcn_forward.2} parent=0 // pred_fallthru
    _
  // Predicated region
  $region50: #{compgcn_forward.2} parent=0 // pred_check
    _
  $region51: #{compgcn_forward.2} parent=0 // pred_check_branch
    %44 = sbr.rel (0) target = $region53
  $region52: #{compgcn_forward.2} parent=0 // pred_region
    _
  $region53: #{compgcn_forward.2} parent=0 // pred_fallthru
    _
  // Predicated region
  $region54: #{compgcn_forward.2} parent=0 // pred_check
    _
  $region55: #{compgcn_forward.2} parent=0 // pred_check_branch
    %46 = sbr.rel (0) target = $region57
  $region56: #{compgcn_forward.2} parent=0 // pred_region
    _
  $region57: #{compgcn_forward.2} parent=0 // pred_fallthru
    _
  %v48 = vld [vmem:[%s0] sm:$0xf]
  %v49 = vld [vmem:[%s0 + $0x4] sm:$0xf]
  %v50 = vld [vmem:[%s0 + $0x8] sm:$0xf]
  %v51 = vld [vmem:[%s0 + $0xc] sm:$0xf]
  %v52 = vld [vmem:[%s0 + $0x10] sm:$0xf]
  %v53 = vld [vmem:[%s0 + $0x14] sm:$0xf]
  %v54 = vld [vmem:[%s0 + $0x18] sm:$0xf]
  %v55 = vld [vmem:[%s0 + $0x1c] sm:$0xf]
  %v56 = vld [vmem:[%s2] sm:$0xf]
  %v57 = vld [vmem:[%s2 + $0x4] sm:$0xf]
  %v58 = vld [vmem:[%s2 + $0x8] sm:$0xf]
  %v59 = vld [vmem:[%s2 + $0xc] sm:$0xf]
  %v60 = vld [vmem:[%s2 + $0x10] sm:$0xf]
  %v61 = vld [vmem:[%s2 + $0x14] sm:$0xf]
  %v62 = vld [vmem:[%s2 + $0x18] sm:$0xf]
  %v63 = vld [vmem:[%s2 + $0x1c] sm:$0xf]
  %v72 = vunpack.c.l.b16 %v48
  %v73 = vunpack.c.l.b16 %v49
  %v74 = vunpack.c.l.b16 %v50
  %v75 = vunpack.c.l.b16 %v51
  %v76 = vunpack.c.l.b16 %v52
  %v77 = vunpack.c.l.b16 %v53
  %v78 = vunpack.c.l.b16 %v54
  %v79 = vunpack.c.l.b16 %v55
  %v80 = vpack.c.b16 %v73, %v72
  %v81 = vpack.c.b16 %v75, %v74
  %v82 = vpack.c.b16 %v77, %v76
  %v83 = vpack.c.b16 %v79, %v78
  %v92 = vunpack.c.l.b16 %v56
  %v93 = vunpack.c.l.b16 %v57
  %v94 = vunpack.c.l.b16 %v58
  %v95 = vunpack.c.l.b16 %v59
  %v96 = vunpack.c.l.b16 %v60
  %v97 = vunpack.c.l.b16 %v61
  %v98 = vunpack.c.l.b16 %v62
  %v99 = vunpack.c.l.b16 %v63
  %v100 = vpack.c.b16 %v93, %v92
  %v101 = vpack.c.b16 %v95, %v94
  %v102 = vpack.c.b16 %v97, %v96
  %v103 = vpack.c.b16 %v99, %v98
  %vm108 = vcmask 523264
  %v110 = vsel %vm108, %v80, 0
  %v113 = vsel %vm108, %v81, 0
  %v116 = vsel %vm108, %v82, 0
  %v119 = vsel %vm108, %v83, 0
  %121 = vmatpush.bf16.msra.mxu0 0
  %122 = vmatpush.bf16.msra.mxu0 0
  %123 = vmatpush.bf16.msra.mxu0 0
  %124 = vmatpush.bf16.msra.mxu0 0
  %125 = vmatpush.bf16.msra.mxu0 %v103
  %126 = vmatpush.bf16.msra.mxu0 %v102
  %127 = vmatpush.bf16.msra.mxu0 %v101
  %128 = vmatpush.bf16.msra.mxu0 %v100
  %129 = vmatmul.bf16.gmra.mxu0 %v110
  %v130 = vpop.f32.mrf.mxu0
  %v131 = vadd.f32 0.0, %v130
  %v132 = vpop.f32.mrf.mxu0
  %v133 = vadd.f32 0.0, %v132
  %134 = vmatmul.bf16.gmra.mxu0 %v113
  %v135 = vpop.f32.mrf.mxu0
  %v136 = vadd.f32 0.0, %v135
  %v137 = vpop.f32.mrf.mxu0
  %v138 = vadd.f32 0.0, %v137
  %139 = vmatmul.bf16.gmra.mxu0 %v116
  %v140 = vpop.f32.mrf.mxu0
  %v141 = vadd.f32 0.0, %v140
  %v142 = vpop.f32.mrf.mxu0
  %v143 = vadd.f32 0.0, %v142
  %144 = vmatmul.bf16.gmra.mxu0 %v119
  %v145 = vpop.f32.mrf.mxu0
  %v146 = vadd.f32 0.0, %v145
  %v147 = vpop.f32.mrf.mxu0
  %v148 = vadd.f32 0.0, %v147
  %149 = vdwg.mxu0
  %v150 = vld [vmem:[%s3] sm:$0xff]
  %v151 = vld [vmem:[%s3 + $0x8] sm:$0xff]
  %v152 = vld [vmem:[%s3 + $0x10] sm:$0xff]
  %v153 = vld [vmem:[%s3 + $0x18] sm:$0xff]
  %v154 = vld [vmem:[%s3 + $0x20] sm:$0xff]
  %v155 = vld [vmem:[%s3 + $0x28] sm:$0xff]
  %v156 = vld [vmem:[%s3 + $0x30] sm:$0xff]
  %v157 = vld [vmem:[%s3 + $0x38] sm:$0xff]
  %v158 = vsub.f32 %v131, %v150
  %v159 = vsub.f32 %v133, %v151
  %v160 = vsub.f32 %v136, %v152
  %v161 = vsub.f32 %v138, %v153
  %v162 = vsub.f32 %v141, %v154
  %v163 = vsub.f32 %v143, %v155
  %v164 = vsub.f32 %v146, %v156
  %v165 = vsub.f32 %v148, %v157
  %v166 = vld [vmem:[%s9] sm:$0xff]
  %v167 = vld [vmem:[%s9 + $0x8] sm:$0xff]
  %v168 = vld [vmem:[%s9 + $0x10] sm:$0xff]
  %v169 = vld [vmem:[%s9 + $0x18] sm:$0xff]
  %v170 = vld [vmem:[%s9 + $0x20] sm:$0xff]
  %v171 = vld [vmem:[%s9 + $0x28] sm:$0xff]
  %v172 = vld [vmem:[%s9 + $0x30] sm:$0xff]
  %v173 = vld [vmem:[%s9 + $0x38] sm:$0xff]
  %175 = vset.pattern.permute.xlu0 0
  %176 = vperm.xlu0 %175, %v166
  %v177 = vpop.permute.xlu0 %176
  %180 = vset.pattern.permute.xlu0 0
  %181 = vperm.xlu0 %180, %v167
  %v182 = vpop.permute.xlu0 %181
  %185 = vset.pattern.permute.xlu0 0
  %186 = vperm.xlu0 %185, %v168
  %v187 = vpop.permute.xlu0 %186
  %190 = vset.pattern.permute.xlu0 0
  %191 = vperm.xlu0 %190, %v169
  %v192 = vpop.permute.xlu0 %191
  %195 = vset.pattern.permute.xlu0 0
  %196 = vperm.xlu0 %195, %v170
  %v197 = vpop.permute.xlu0 %196
  %200 = vset.pattern.permute.xlu0 0
  %201 = vperm.xlu0 %200, %v171
  %v202 = vpop.permute.xlu0 %201
  %205 = vset.pattern.permute.xlu0 0
  %206 = vperm.xlu0 %205, %v172
  %v207 = vpop.permute.xlu0 %206
  %210 = vset.pattern.permute.xlu0 0
  %211 = vperm.xlu0 %210, %v173
  %v212 = vpop.permute.xlu0 %211
  %v214 = vmul.f32 %v158, %v177
  %v215 = vmul.f32 %v159, %v182
  %v216 = vmul.f32 %v160, %v187
  %v217 = vmul.f32 %v161, %v192
  %v218 = vmul.f32 %v162, %v197
  %v219 = vmul.f32 %v163, %v202
  %v220 = vmul.f32 %v164, %v207
  %v221 = vmul.f32 %v165, %v212
  %v222 = vpack.c.bf16 %v215, %v214
  %v223 = vpack.c.bf16 %v217, %v216
  %v224 = vpack.c.bf16 %v219, %v218
  %v225 = vpack.c.bf16 %v221, %v220
  %v226 = vld [vmem:[%s6] sm:$0xf]
  %v227 = vld [vmem:[%s6 + $0x4] sm:$0xf]
  %v228 = vld [vmem:[%s6 + $0x8] sm:$0xf]
  %v229 = vld [vmem:[%s6 + $0xc] sm:$0xf]
  %v230 = vld [vmem:[%s6 + $0x10] sm:$0xf]
  %v231 = vld [vmem:[%s6 + $0x14] sm:$0xf]
  %v232 = vld [vmem:[%s6 + $0x18] sm:$0xf]
  %v233 = vld [vmem:[%s6 + $0x1c] sm:$0xf]
  %v234 = vld [vmem:[%s6 + $0x20] sm:$0xf]
  %v235 = vld [vmem:[%s6 + $0x24] sm:$0xf]
  %v236 = vld [vmem:[%s6 + $0x28] sm:$0xf]
  %v237 = vld [vmem:[%s6 + $0x2c] sm:$0xf]
  %v238 = vld [vmem:[%s6 + $0x30] sm:$0xf]
  %v239 = vld [vmem:[%s6 + $0x34] sm:$0xf]
  %v240 = vld [vmem:[%s6 + $0x38] sm:$0xf]
  %v241 = vld [vmem:[%s6 + $0x3c] sm:$0xf]
  %v242 = vld [vmem:[%s1] sm:$0xf]
  %v243 = vld [vmem:[%s1 + $0x4] sm:$0xf]
  %v244 = vld [vmem:[%s1 + $0x8] sm:$0xf]
  %v245 = vld [vmem:[%s1 + $0xc] sm:$0xf]
  %v246 = vld [vmem:[%s1 + $0x10] sm:$0xf]
  %v247 = vld [vmem:[%s1 + $0x14] sm:$0xf]
  %v248 = vld [vmem:[%s1 + $0x18] sm:$0xf]
  %v249 = vld [vmem:[%s1 + $0x1c] sm:$0xf]
  %v258 = vunpack.c.l.b16 %v242
  %v259 = vunpack.c.l.b16 %v243
  %v260 = vunpack.c.l.b16 %v244
  %v261 = vunpack.c.l.b16 %v245
  %v262 = vunpack.c.l.b16 %v246
  %v263 = vunpack.c.l.b16 %v247
  %v264 = vunpack.c.l.b16 %v248
  %v265 = vunpack.c.l.b16 %v249
  %v266 = vpack.c.b16 %v259, %v258
  %v267 = vpack.c.b16 %v261, %v260
  %v268 = vpack.c.b16 %v263, %v262
  %v269 = vpack.c.b16 %v265, %v264
  %v271 = vsel %vm108, %v266, 0
  %v274 = vsel %vm108, %v267, 0
  %v277 = vsel %vm108, %v268, 0
  %v280 = vsel %vm108, %v269, 0
  %282 = vmatpush.bf16.msra.mxu0 0
  %283 = vmatpush.bf16.msra.mxu0 0
  %284 = vmatpush.bf16.msra.mxu0 0
  %285 = vmatpush.bf16.msra.mxu0 0
  %286 = vmatpush.bf16.msra.mxu0 %v103
  %287 = vmatpush.bf16.msra.mxu0 %v102
  %288 = vmatpush.bf16.msra.mxu0 %v101
  %289 = vmatpush.bf16.msra.mxu0 %v100
  %290 = vmatmul.bf16.gmra.mxu0 %v271
  %v291 = vpop.f32.mrf.mxu0
  %v292 = vadd.f32 0.0, %v291
  %v293 = vpop.f32.mrf.mxu0
  %v294 = vadd.f32 0.0, %v293
  %295 = vmatmul.bf16.gmra.mxu0 %v274
  %v296 = vpop.f32.mrf.mxu0
  %v297 = vadd.f32 0.0, %v296
  %v298 = vpop.f32.mrf.mxu0
  %v299 = vadd.f32 0.0, %v298
  %300 = vmatmul.bf16.gmra.mxu0 %v277
  %v301 = vpop.f32.mrf.mxu0
  %v302 = vadd.f32 0.0, %v301
  %v303 = vpop.f32.mrf.mxu0
  %v304 = vadd.f32 0.0, %v303
  %305 = vmatmul.bf16.gmra.mxu0 %v280
  %v306 = vpop.f32.mrf.mxu0
  %v307 = vadd.f32 0.0, %v306
  %v308 = vpop.f32.mrf.mxu0
  %v309 = vadd.f32 0.0, %v308
  %310 = vdwg.mxu0
  %v311 = vld [vmem:[%s4] sm:$0xff]
  %v312 = vld [vmem:[%s4 + $0x8] sm:$0xff]
  %v313 = vld [vmem:[%s4 + $0x10] sm:$0xff]
  %v314 = vld [vmem:[%s4 + $0x18] sm:$0xff]
  %v315 = vld [vmem:[%s4 + $0x20] sm:$0xff]
  %v316 = vld [vmem:[%s4 + $0x28] sm:$0xff]
  %v317 = vld [vmem:[%s4 + $0x30] sm:$0xff]
  %v318 = vld [vmem:[%s4 + $0x38] sm:$0xff]
  %v319 = vsub.f32 %v292, %v311
  %v320 = vsub.f32 %v294, %v312
  %v321 = vsub.f32 %v297, %v313
  %v322 = vsub.f32 %v299, %v314
  %v323 = vsub.f32 %v302, %v315
  %v324 = vsub.f32 %v304, %v316
  %v325 = vsub.f32 %v307, %v317
  %v326 = vsub.f32 %v309, %v318
  %v327 = vld [vmem:[%s10] sm:$0xff]
  %v328 = vld [vmem:[%s10 + $0x8] sm:$0xff]
  %v329 = vld [vmem:[%s10 + $0x10] sm:$0xff]
  %v330 = vld [vmem:[%s10 + $0x18] sm:$0xff]
  %v331 = vld [vmem:[%s10 + $0x20] sm:$0xff]
  %v332 = vld [vmem:[%s10 + $0x28] sm:$0xff]
  %v333 = vld [vmem:[%s10 + $0x30] sm:$0xff]
  %v334 = vld [vmem:[%s10 + $0x38] sm:$0xff]
  %336 = vset.pattern.permute.xlu0 0
  %337 = vperm.xlu0 %336, %v327
  %v338 = vpop.permute.xlu0 %337
  %341 = vset.pattern.permute.xlu0 0
  %342 = vperm.xlu0 %341, %v328
  %v343 = vpop.permute.xlu0 %342
  %346 = vset.pattern.permute.xlu0 0
  %347 = vperm.xlu0 %346, %v329
  %v348 = vpop.permute.xlu0 %347
  %351 = vset.pattern.permute.xlu0 0
  %352 = vperm.xlu0 %351, %v330
  %v353 = vpop.permute.xlu0 %352
  %356 = vset.pattern.permute.xlu0 0
  %357 = vperm.xlu0 %356, %v331
  %v358 = vpop.permute.xlu0 %357
  %361 = vset.pattern.permute.xlu0 0
  %362 = vperm.xlu0 %361, %v332
  %v363 = vpop.permute.xlu0 %362
  %366 = vset.pattern.permute.xlu0 0
  %367 = vperm.xlu0 %366, %v333
  %v368 = vpop.permute.xlu0 %367
  %371 = vset.pattern.permute.xlu0 0
  %372 = vperm.xlu0 %371, %v334
  %v373 = vpop.permute.xlu0 %372
  %v375 = vmul.f32 %v319, %v338
  %v376 = vmul.f32 %v320, %v343
  %v377 = vmul.f32 %v321, %v348
  %v378 = vmul.f32 %v322, %v353
  %v379 = vmul.f32 %v323, %v358
  %v380 = vmul.f32 %v324, %v363
  %v381 = vmul.f32 %v325, %v368
  %v382 = vmul.f32 %v326, %v373
  %v383 = vpack.c.bf16 %v376, %v375
  %v384 = vpack.c.bf16 %v378, %v377
  %v385 = vpack.c.bf16 %v380, %v379
  %v386 = vpack.c.bf16 %v382, %v381
  %v387 = vld [vmem:[%s7] sm:$0xf]
  %v388 = vld [vmem:[%s7 + $0x4] sm:$0xf]
  %v389 = vld [vmem:[%s7 + $0x8] sm:$0xf]
  %v390 = vld [vmem:[%s7 + $0xc] sm:$0xf]
  %v391 = vld [vmem:[%s7 + $0x10] sm:$0xf]
  %v392 = vld [vmem:[%s7 + $0x14] sm:$0xf]
  %v393 = vld [vmem:[%s7 + $0x18] sm:$0xf]
  %v394 = vld [vmem:[%s7 + $0x1c] sm:$0xf]
  %v395 = vld [vmem:[%s7 + $0x20] sm:$0xf]
  %v396 = vld [vmem:[%s7 + $0x24] sm:$0xf]
  %v397 = vld [vmem:[%s7 + $0x28] sm:$0xf]
  %v398 = vld [vmem:[%s7 + $0x2c] sm:$0xf]
  %v399 = vld [vmem:[%s7 + $0x30] sm:$0xf]
  %v400 = vld [vmem:[%s7 + $0x34] sm:$0xf]
  %v401 = vld [vmem:[%s7 + $0x38] sm:$0xf]
  %v402 = vld [vmem:[%s7 + $0x3c] sm:$0xf]
  %v419 = vunpack.c.l.b16 %v387
  %v420 = vunpack.c.l.b16 %v388
  %v421 = vunpack.c.l.b16 %v389
  %v422 = vunpack.c.l.b16 %v390
  %v423 = vunpack.c.l.b16 %v391
  %v424 = vunpack.c.l.b16 %v392
  %v425 = vunpack.c.l.b16 %v393
  %v426 = vunpack.c.l.b16 %v394
  %v427 = vunpack.c.l.b16 %v395
  %v428 = vunpack.c.l.b16 %v396
  %v429 = vunpack.c.l.b16 %v397
  %v430 = vunpack.c.l.b16 %v398
  %v431 = vunpack.c.l.b16 %v399
  %v432 = vunpack.c.l.b16 %v400
  %v433 = vunpack.c.l.b16 %v401
  %v434 = vunpack.c.l.b16 %v402
  %v435 = vpack.c.b16 %v420, %v419
  %v436 = vpack.c.b16 %v422, %v421
  %v437 = vpack.c.b16 %v424, %v423
  %v438 = vpack.c.b16 %v426, %v425
  %v439 = vpack.c.b16 %v428, %v427
  %v440 = vpack.c.b16 %v430, %v429
  %v441 = vpack.c.b16 %v432, %v431
  %v442 = vpack.c.b16 %v434, %v433
  %451 = vmatpush.bf16.msra.mxu0 %v442
  %452 = vmatpush.bf16.msra.mxu0 %v441
  %453 = vmatpush.bf16.msra.mxu0 %v440
  %454 = vmatpush.bf16.msra.mxu0 %v439
  %455 = vmatpush.bf16.msra.mxu0 %v438
  %456 = vmatpush.bf16.msra.mxu0 %v437
  %457 = vmatpush.bf16.msra.mxu0 %v436
  %458 = vmatpush.bf16.msra.mxu0 %v435
  %459 = vmatmul.bf16.gmra.mxu0 %v383
  %v460 = vpop.f32.mrf.mxu0
  %v461 = vadd.f32 0.0, %v460
  %v462 = vpop.f32.mrf.mxu0
  %v463 = vadd.f32 0.0, %v462
  %464 = vmatmul.bf16.gmra.mxu0 %v384
  %v465 = vpop.f32.mrf.mxu0
  %v466 = vadd.f32 0.0, %v465
  %v467 = vpop.f32.mrf.mxu0
  %v468 = vadd.f32 0.0, %v467
  %469 = vmatmul.bf16.gmra.mxu0 %v385
  %v470 = vpop.f32.mrf.mxu0
  %v471 = vadd.f32 0.0, %v470
  %v472 = vpop.f32.mrf.mxu0
  %v473 = vadd.f32 0.0, %v472
  %474 = vmatmul.bf16.gmra.mxu0 %v386
  %v475 = vpop.f32.mrf.mxu0
  %v476 = vadd.f32 0.0, %v475
  %v477 = vpop.f32.mrf.mxu0
  %v478 = vadd.f32 0.0, %v477
  %479 = vdwg.mxu0
  %v480 = vunpack.c.l.bf16 %v56
  %v481 = vunpack.c.l.bf16 %v57
  %v482 = vunpack.c.l.bf16 %v58
  %v483 = vunpack.c.l.bf16 %v59
  %v484 = vunpack.c.l.bf16 %v60
  %v485 = vunpack.c.l.bf16 %v61
  %v486 = vunpack.c.l.bf16 %v62
  %v487 = vunpack.c.l.bf16 %v63
  %v488 = vld [vmem:[%s5] sm:$0x1]
  %v490 = vperm.slane %v488, 0
  %v492 = vsub.f32 %v480, %v490
  %v493 = vsub.f32 %v481, %v490
  %v494 = vsub.f32 %v482, %v490
  %v495 = vsub.f32 %v483, %v490
  %v496 = vsub.f32 %v484, %v490
  %v497 = vsub.f32 %v485, %v490
  %v498 = vsub.f32 %v486, %v490
  %v499 = vsub.f32 %v487, %v490
  %v500 = vpack.c.bf16 %v493, %v492
  %v501 = vpack.c.bf16 %v495, %v494
  %v502 = vpack.c.bf16 %v497, %v496
  %v503 = vpack.c.bf16 %v499, %v498
  %v504 = vld [vmem:[%s8] sm:$0xf]
  %v505 = vld [vmem:[%s8 + $0x4] sm:$0xf]
  %v506 = vld [vmem:[%s8 + $0x8] sm:$0xf]
  %v507 = vld [vmem:[%s8 + $0xc] sm:$0xf]
  %v508 = vld [vmem:[%s8 + $0x10] sm:$0xf]
  %v509 = vld [vmem:[%s8 + $0x14] sm:$0xf]
  %v510 = vld [vmem:[%s8 + $0x18] sm:$0xf]
  %v511 = vld [vmem:[%s8 + $0x1c] sm:$0xf]
  %v512 = vld [vmem:[%s8 + $0x20] sm:$0xf]
  %v513 = vld [vmem:[%s8 + $0x24] sm:$0xf]
  %v514 = vld [vmem:[%s8 + $0x28] sm:$0xf]
  %v515 = vld [vmem:[%s8 + $0x2c] sm:$0xf]
  %v516 = vld [vmem:[%s8 + $0x30] sm:$0xf]
  %v517 = vld [vmem:[%s8 + $0x34] sm:$0xf]
  %v518 = vld [vmem:[%s8 + $0x38] sm:$0xf]
  %v519 = vld [vmem:[%s8 + $0x3c] sm:$0xf]
  %v536 = vunpack.c.l.b16 %v504
  %v537 = vunpack.c.l.b16 %v505
  %v538 = vunpack.c.l.b16 %v506
  %v539 = vunpack.c.l.b16 %v507
  %v540 = vunpack.c.l.b16 %v508
  %v541 = vunpack.c.l.b16 %v509
  %v542 = vunpack.c.l.b16 %v510
  %v543 = vunpack.c.l.b16 %v511
  %v544 = vunpack.c.l.b16 %v512
  %v545 = vunpack.c.l.b16 %v513
  %v546 = vunpack.c.l.b16 %v514
  %v547 = vunpack.c.l.b16 %v515
  %v548 = vunpack.c.l.b16 %v516
  %v549 = vunpack.c.l.b16 %v517
  %v550 = vunpack.c.l.b16 %v518
  %v551 = vunpack.c.l.b16 %v519
  %v552 = vpack.c.b16 %v537, %v536
  %v553 = vpack.c.b16 %v539, %v538
  %v554 = vpack.c.b16 %v541, %v540
  %v555 = vpack.c.b16 %v543, %v542
  %v556 = vpack.c.b16 %v545, %v544
  %v557 = vpack.c.b16 %v547, %v546
  %v558 = vpack.c.b16 %v549, %v548
  %v559 = vpack.c.b16 %v551, %v550
  %568 = vmatpush.bf16.msra.mxu0 %v559
  %569 = vmatpush.bf16.msra.mxu0 %v558
  %570 = vmatpush.bf16.msra.mxu0 %v557
  %571 = vmatpush.bf16.msra.mxu0 %v556
  %572 = vmatpush.bf16.msra.mxu0 %v555
  %573 = vmatpush.bf16.msra.mxu0 %v554
  %574 = vmatpush.bf16.msra.mxu0 %v553
  %575 = vmatpush.bf16.msra.mxu0 %v552
  %576 = vmatmul.bf16.gmra.mxu0 %v500
  %v577 = vpop.f32.mrf.mxu0
  %v578 = vadd.f32 0.0, %v577
  %v579 = vpop.f32.mrf.mxu0
  %v580 = vadd.f32 0.0, %v579
  %581 = vmatmul.bf16.gmra.mxu0 %v501
  %v582 = vpop.f32.mrf.mxu0
  %v583 = vadd.f32 0.0, %v582
  %v584 = vpop.f32.mrf.mxu0
  %v585 = vadd.f32 0.0, %v584
  %586 = vmatmul.bf16.gmra.mxu0 %v502
  %v587 = vpop.f32.mrf.mxu0
  %v588 = vadd.f32 0.0, %v587
  %v589 = vpop.f32.mrf.mxu0
  %v590 = vadd.f32 0.0, %v589
  %591 = vmatmul.bf16.gmra.mxu0 %v503
  %v592 = vpop.f32.mrf.mxu0
  %v593 = vadd.f32 0.0, %v592
  %v594 = vpop.f32.mrf.mxu0
  %v595 = vadd.f32 0.0, %v594
  %596 = vdwg.mxu0
  %v613 = vunpack.c.l.b16 %v226
  %v614 = vunpack.c.l.b16 %v227
  %v615 = vunpack.c.l.b16 %v228
  %v616 = vunpack.c.l.b16 %v229
  %v617 = vunpack.c.l.b16 %v230
  %v618 = vunpack.c.l.b16 %v231
  %v619 = vunpack.c.l.b16 %v232
  %v620 = vunpack.c.l.b16 %v233
  %v621 = vunpack.c.l.b16 %v234
  %v622 = vunpack.c.l.b16 %v235
  %v623 = vunpack.c.l.b16 %v236
  %v624 = vunpack.c.l.b16 %v237
  %v625 = vunpack.c.l.b16 %v238
  %v626 = vunpack.c.l.b16 %v239
  %v627 = vunpack.c.l.b16 %v240
  %v628 = vunpack.c.l.b16 %v241
  %v629 = vpack.c.b16 %v614, %v613
  %v630 = vpack.c.b16 %v616, %v615
  %v631 = vpack.c.b16 %v618, %v617
  %v632 = vpack.c.b16 %v620, %v619
  %v633 = vpack.c.b16 %v622, %v621
  %v634 = vpack.c.b16 %v624, %v623
  %v635 = vpack.c.b16 %v626, %v625
  %v636 = vpack.c.b16 %v628, %v627
  %645 = vmatpush.bf16.msra.mxu0 %v636
  %646 = vmatpush.bf16.msra.mxu0 %v635
  %647 = vmatpush.bf16.msra.mxu0 %v634
  %648 = vmatpush.bf16.msra.mxu0 %v633
  %649 = vmatpush.bf16.msra.mxu0 %v632
  %650 = vmatpush.bf16.msra.mxu0 %v631
  %651 = vmatpush.bf16.msra.mxu0 %v630
  %652 = vmatpush.bf16.msra.mxu0 %v629
  %653 = vmatmul.bf16.gmra.mxu0 %v222
  %v654 = vpop.f32.mrf.mxu0
  %v655 = vadd.f32 %v461, %v654
  %v656 = vpop.f32.mrf.mxu0
  %v657 = vadd.f32 %v463, %v656
  %658 = vmatmul.bf16.gmra.mxu0 %v223
  %v659 = vpop.f32.mrf.mxu0
  %v660 = vadd.f32 %v466, %v659
  %v661 = vpop.f32.mrf.mxu0
  %v662 = vadd.f32 %v468, %v661
  %663 = vmatmul.bf16.gmra.mxu0 %v224
  %v664 = vpop.f32.mrf.mxu0
  %v665 = vadd.f32 %v471, %v664
  %v666 = vpop.f32.mrf.mxu0
  %v667 = vadd.f32 %v473, %v666
  %668 = vmatmul.bf16.gmra.mxu0 %v225
  %v669 = vpop.f32.mrf.mxu0
  %v670 = vadd.f32 %v476, %v669
  %v671 = vpop.f32.mrf.mxu0
  %v672 = vadd.f32 %v478, %v671
  %673 = vdwg.mxu0
  %v674 = vadd.f32 %v655, %v578
  %v675 = vadd.f32 %v657, %v580
  %v676 = vadd.f32 %v660, %v583
  %v677 = vadd.f32 %v662, %v585
  %v678 = vadd.f32 %v665, %v588
  %v679 = vadd.f32 %v667, %v590
  %v680 = vadd.f32 %v670, %v593
  %v681 = vadd.f32 %v672, %v595
  %v682 = vmul.f32 %v674, 0.33333334
  %v683 = vmul.f32 %v675, 0.33333334
  %v684 = vmul.f32 %v676, 0.33333334
  %v685 = vmul.f32 %v677, 0.33333334
  %v686 = vmul.f32 %v678, 0.33333334
  %v687 = vmul.f32 %v679, 0.33333334
  %v688 = vmul.f32 %v680, 0.33333334
  %v689 = vmul.f32 %v681, 0.33333334
  %v690 = vld [vmem:[%s11] sm:$0x1]
  %v692 = vperm.slane %v690, 0
  %v694 = vadd.f32 %v682, %v692
  %v695 = vadd.f32 %v683, %v692
  %v696 = vadd.f32 %v684, %v692
  %v697 = vadd.f32 %v685, %v692
  %v698 = vadd.f32 %v686, %v692
  %v699 = vadd.f32 %v687, %v692
  %v700 = vadd.f32 %v688, %v692
  %v701 = vadd.f32 %v689, %v692
  %v702 = vadd.f32 %v694, %v695
  %v703 = vadd.f32 %v702, %v696
  %v704 = vadd.f32 %v703, %v697
  %v705 = vadd.f32 %v704, %v698
  %v706 = vadd.f32 %v705, %v699
  %v707 = vadd.f32 %v706, %v700
  %v708 = vadd.f32 %v707, %v701
  %v709 = vrot.slane %v708, 4
  %v710 = vadd.f32 %v708, %v709
  %v711 = vrot.slane %v710, 2
  %v712 = vadd.f32 %v710, %v711
  %v713 = vrot.slane %v712, 1
  %v714 = vadd.f32 %v712, %v713
  %v715 = vrcp.pop 64.0
  %v716 = vmul.f32 64.0, %v715
  %v717 = vsub.f32 1.0, %v716
  %v718 = vmul.f32 %v715, %v717
  %v719 = vadd.f32 %v715, %v718
  %vm720 = vweird.f32 %v715
  %v721 = vsel %vm720, %v715, %v719
  %v722 = vmul.f32 %v714, %v721
  %v723 = vsub.f32 %v694, %v722
  %v724 = vsub.f32 %v695, %v722
  %v725 = vsub.f32 %v696, %v722
  %v726 = vsub.f32 %v697, %v722
  %v727 = vsub.f32 %v698, %v722
  %v728 = vsub.f32 %v699, %v722
  %v729 = vsub.f32 %v700, %v722
  %v730 = vsub.f32 %v701, %v722
  %v731 = vmul.f32 %v723, %v723
  %v732 = vmul.f32 %v724, %v724
  %v733 = vmul.f32 %v725, %v725
  %v734 = vmul.f32 %v726, %v726
  %v735 = vmul.f32 %v727, %v727
  %v736 = vmul.f32 %v728, %v728
  %v737 = vmul.f32 %v729, %v729
  %v738 = vmul.f32 %v730, %v730
  %v739 = vadd.f32 %v731, %v732
  %v740 = vadd.f32 %v739, %v733
  %v741 = vadd.f32 %v740, %v734
  %v742 = vadd.f32 %v741, %v735
  %v743 = vadd.f32 %v742, %v736
  %v744 = vadd.f32 %v743, %v737
  %v745 = vadd.f32 %v744, %v738
  %v746 = vrot.slane %v745, 4
  %v747 = vadd.f32 %v745, %v746
  %v748 = vrot.slane %v747, 2
  %v749 = vadd.f32 %v747, %v748
  %v750 = vrot.slane %v749, 1
  %v751 = vadd.f32 %v749, %v750
  %v752 = vmul.f32 %v751, %v721
  %v753 = vadd.f32 %v752, 1e-05
  %v754 = vrsqrt.pop %v753
  %v755 = vmul.f32 %v754, %v753
  %v756 = vmul.f32 %v755, %v754
  %v757 = vmul.f32 0.5, %v756
  %v758 = vsub.f32 1.5, %v757
  %v759 = vmul.f32 %v754, %v758
  %vm760 = vweird.f32 %v753
  %vm761 = vweird.f32 %v754
  %vm762 = vmor %vm760, %vm761
  %v763 = vsel %vm762, %v754, %v759
  %v764 = vmul.f32 %v723, %v763
  %v765 = vmul.f32 %v724, %v763
  %v766 = vmul.f32 %v725, %v763
  %v767 = vmul.f32 %v726, %v763
  %v768 = vmul.f32 %v727, %v763
  %v769 = vmul.f32 %v728, %v763
  %v770 = vmul.f32 %v729, %v763
  %v771 = vmul.f32 %v730, %v763
  %v772 = vld [vmem:[%s12] sm:$0x1]
  %v774 = vperm.slane %v772, 0
  %v776 = vmul.f32 %v764, %v774
  %v777 = vmul.f32 %v765, %v774
  %v778 = vmul.f32 %v766, %v774
  %v779 = vmul.f32 %v767, %v774
  %v780 = vmul.f32 %v768, %v774
  %v781 = vmul.f32 %v769, %v774
  %v782 = vmul.f32 %v770, %v774
  %v783 = vmul.f32 %v771, %v774
  %v784 = vld [vmem:[%s13] sm:$0x1]
  %v786 = vperm.slane %v784, 0
  %v788 = vadd.f32 %v776, %v786
  %v789 = vadd.f32 %v777, %v786
  %v790 = vadd.f32 %v778, %v786
  %v791 = vadd.f32 %v779, %v786
  %v792 = vadd.f32 %v780, %v786
  %v793 = vadd.f32 %v781, %v786
  %v794 = vadd.f32 %v782, %v786
  %v795 = vadd.f32 %v783, %v786
  %v796 = vmax.f32 %v788, 0.0
  %v797 = vmax.f32 %v789, 0.0
  %v798 = vmax.f32 %v790, 0.0
  %v799 = vmax.f32 %v791, 0.0
  %v800 = vmax.f32 %v792, 0.0
  %v801 = vmax.f32 %v793, 0.0
  %v802 = vmax.f32 %v794, 0.0
  %v803 = vmax.f32 %v795, 0.0
  %804 = vst [vmem:[%s14] sm:$0xff] %v796
  %805 = vst [vmem:[%s14 + $0x8] sm:$0xff] %v797
  %806 = vst [vmem:[%s14 + $0x10] sm:$0xff] %v798
  %807 = vst [vmem:[%s14 + $0x18] sm:$0xff] %v799
  %808 = vst [vmem:[%s14 + $0x20] sm:$0xff] %v800
  %809 = vst [vmem:[%s14 + $0x28] sm:$0xff] %v801
  %810 = vst [vmem:[%s14 + $0x30] sm:$0xff] %v802
  %811 = vst [vmem:[%s14 + $0x38] sm:$0xff] %v803
  // Predicated region
  $region58: #{compgcn_forward.2} parent=0 // pred_check
    _
  $region59: #{compgcn_forward.2} parent=0 // pred_check_branch
    %813 = sbr.rel (0) target = $region61
  $region60: #{compgcn_forward.2} parent=0 // pred_region
    _
  $region61: #{compgcn_forward.2} parent=0 // pred_fallthru
    _
  // Predicated region
  $region62: #{compgcn_forward.2} parent=0 // pred_check
    _
  $region63: #{compgcn_forward.2} parent=0 // pred_check_branch
    %815 = sbr.rel (0) target = $region65
  $region64: #{compgcn_forward.2} parent=0 // pred_region
    _
  $region65: #{compgcn_forward.2} parent=0 // pred_fallthru
    _

</llo_original>
